<compile_context>
chip_gen: v7x
topology: tpu7x:2x2x1
jax: 0.10.0
libtpu: 0.0.40
codegen_flags: <defaults>
</compile_context>

<pallas_src>
import functools
import math

import jax
import jax.numpy as jnp
from jax import lax
from jax.experimental import pallas as pl
from jax.experimental.pallas import tpu as pltpu


# --------------------------------- sizing helpers ---------------------------------
def _vmem_budget_bytes(frac=0.75):
    """Per-generation VMEM budget: physical capacity minus ~25% headroom for Mosaic scratch.

    Falls back to a conservative 64 MiB (v7x physical) if the query is unavailable."""
    cap = 64 * 1024 * 1024
    try:
        info = pltpu.get_tpu_info()
        cap = int(getattr(info, "vmem_capacity_bytes", cap))
    except Exception:
        pass
    return int(cap * frac)


def _pick_tile(dim, candidates):
    """Largest candidate that evenly divides `dim`; falls back to the full dim."""
    for c in candidates:
        if dim % c == 0:
            return c
    return dim


def _attn_step_vmem_bytes(tq, L, D):
    """Rough per-step VMEM footprint of the attention kernel (double-buffered pipeline)."""
    bf16, f32 = 2, 4
    dbl = 2                                   # default double buffering
    b = 0
    b += dbl * tq * D * bf16                  # q block
    b += dbl * 2 * L * D * bf16               # k, v blocks
    b += dbl * 2 * tq * L * D * bf16          # rel_k, rel_v blocks
    b += dbl * tq * D * bf16                  # ctx output block
    b += dbl * tq * L * f32                   # attn output block
    b += 4 * tq * L * f32                     # live [tq, L] f32 temporaries (scores/e/w/...)
    b += 2 * tq * L * D * f32                 # f32 product temporaries for the VPU rel path
    return b


def _pick_attn_tq(B, L, D, budget_bytes):
    cands = [c for c in (512, 256, 128, 64, 32, 16, 8) if L % c == 0]
    if not cands:
        cands = [L]
    tq = cands[-1]
    for c in cands:
        if _attn_step_vmem_bytes(c, L, D) <= budget_bytes:
            tq = c
            break
    # v7x megacore: the two 'parallel' grid axes (q-tile, batch) must give >= 2 iterations,
    # otherwise one TensorCore sits idle.  Halve tq if batch alone can't provide parallelism.
    while B * (L // tq) < 2 and tq % 2 == 0 and tq > 8:
        tq //= 2
    return tq


# ----------------------------- tiled linear projection kernel -----------------------------
def _linear_kernel(x_ref, w_ref, b_ref, o_ref, acc_ref):
    k = pl.program_id(2)

    @pl.when(k == 0)
    def _():
        acc_ref[...] = jnp.zeros_like(acc_ref)

    acc_ref[...] += jnp.dot(
        x_ref[...].astype(jnp.bfloat16),
        w_ref[...].astype(jnp.bfloat16),
        preferred_element_type=jnp.float32,
    )

    @pl.when(k == pl.num_programs(2) - 1)
    def _():
        # f32 accumulate + f32 bias, cast once on the way out (bf16 for projections).
        o_ref[...] = (acc_ref[...] + b_ref[...]).astype(o_ref.dtype)


def linear(x2d, w, b, out_dtype=jnp.bfloat16):
    """y = x2d @ w + b, tiled over (M, N, K) with double-buffered pipelining."""
    M, K = x2d.shape
    _, N = w.shape
    tm = _pick_tile(M, (256, 128, 64, 32, 16, 8))
    tn = _pick_tile(N, (512, 256, 128)) if N % 128 == 0 else N
    tk = _pick_tile(K, (512, 256, 128)) if K % 128 == 0 else K
    grid = (M // tm, N // tn, K // tk)
    return pl.pallas_call(
        _linear_kernel,
        grid=grid,
        in_specs=[
            pl.BlockSpec((tm, tk), lambda i, j, k: (i, k)),
            pl.BlockSpec((tk, tn), lambda i, j, k: (k, j)),
            pl.BlockSpec((1, tn), lambda i, j, k: (0, j)),
        ],
        out_specs=pl.BlockSpec((tm, tn), lambda i, j, k: (i, j)),
        out_shape=jax.ShapeDtypeStruct((M, N), out_dtype),
        scratch_shapes=[pltpu.VMEM((tm, tn), jnp.float32)],
        compiler_params=pltpu.CompilerParams(
            dimension_semantics=("parallel", "parallel", "arbitrary"),
            vmem_limit_bytes=_vmem_budget_bytes(),
        ),
    )(x2d, w, b.reshape(1, N))


# --------------------------- relative attention core kernel -------------------------
def _rel_attention_kernel(q_ref, k_ref, v_ref, rk_ref, rv_ref,
                          ctx_ref, attn_ref, *, scale, inv_heads):
    h = pl.program_id(2)

    q = q_ref[0, 0].astype(jnp.float32) * scale     # [tq, D] f32, scaled once (used twice)
    qb = q.astype(jnp.bfloat16)
    kb = k_ref[0, 0]                                # [L, D] bf16
    vb = v_ref[0, 0]                                # [L, D] bf16
    rk = rk_ref[...]                                # [tq, L, D] bf16
    rv = rv_ref[...]                                # [tq, L, D] bf16

    # scores[i, j] = q[i] . k[j]  — MXU dot_general contracting over D (no in-kernel transpose)
    scores = lax.dot_general(qb, kb, (((1,), (1,)), ((), ())),
                             preferred_element_type=jnp.float32)           # [tq, L]
    # rel_scores[i, j] = q[i] . rk[i, j]  — VPU multiply + XLU lane reduce; this rides in
    # otherwise idle slots (kernel is DMA-bound) instead of tq unrolled (1xD)x(DxL) matmuls.
    rel_scores = jnp.sum(q[:, None, :] * rk, axis=-1)                      # [tq, L] f32
    logits = scores + rel_scores

    # softmax over keys (mask=None path; max-subtracted; exact divide for parity)
    m = jnp.max(logits, axis=-1, keepdims=True)
    e = jnp.exp(logits - m)
    denom = jnp.sum(e, axis=-1, keepdims=True)
    w = e / denom                                                          # [tq, L] f32
    wb = w.astype(jnp.bfloat16)

    # ctx[i, d] = sum_j w[i, j] v[j, d]   (MXU)  +  sum_j w[i, j] rv[i, j, d]  (VPU + XLU)
    ctx = lax.dot_general(wb, vb, (((1,), (0,)), ((), ())),
                          preferred_element_type=jnp.float32)              # [tq, D]
    rel_ctx = jnp.sum(w[:, :, None] * rv, axis=1)                          # [tq, D] f32
    ctx_ref[0, 0] = (ctx + rel_ctx).astype(ctx_ref.dtype)

    # Head-mean attention accumulated in VMEM across the innermost ('arbitrary') head axis;
    # raw weights are accumulated and the 1/H scale is applied once on the last head step.
    @pl.when(h == 0)
    def _():
        attn_ref[...] = jnp.zeros_like(attn_ref)

    attn_ref[...] += w[None]

    @pl.when(h == pl.num_programs(2) - 1)
    def _():
        attn_ref[...] = attn_ref[...] * inv_heads


def relative_attention(query_up, key_up, value_up, rel_k, rel_v):
    """query_up/key_up/value_up: [B, H, L, D] (bf16); rel_k/rel_v: [L, L, D] (bf16).

    Returns (ctx [B,H,L,D] bf16, top_attn [B,L,L] f32 = mean over heads of the attention)."""
    B, H, L, D = query_up.shape
    scale = 1.0 / math.sqrt(D)
    budget = _vmem_budget_bytes()
    tq = _pick_attn_tq(B, L, D, budget)
    # Grid: q-tile outermost, batch middle, head innermost.  rel_k/rel_v block indices depend
    # only on qi, so those (tq, L, D) blocks are fetched once per q-tile and reused across all
    # batches and heads; the head axis stays last/'arbitrary' for the attn accumulator.
    grid = (L // tq, B, H)
    # TODO(synk): for very long sequences also tile the key axis (flash-style online softmax)
    # so k/v and the rel blocks stop scaling with full L.
    ctx, top_attn = pl.pallas_call(
        functools.partial(_rel_attention_kernel, scale=scale, inv_heads=1.0 / H),
        grid=grid,
        in_specs=[
            pl.BlockSpec((1, 1, tq, D), lambda qi, b, h: (b, h, qi, 0)),   # q tile
            pl.BlockSpec((1, 1, L, D), lambda qi, b, h: (b, h, 0, 0)),     # k (full keys)
            pl.BlockSpec((1, 1, L, D), lambda qi, b, h: (b, h, 0, 0)),     # v (full keys)
            pl.BlockSpec((tq, L, D), lambda qi, b, h: (qi, 0, 0)),         # rel_k row tile
            pl.BlockSpec((tq, L, D), lambda qi, b, h: (qi, 0, 0)),         # rel_v row tile
        ],
        out_specs=[
            pl.BlockSpec((1, 1, tq, D), lambda qi, b, h: (b, h, qi, 0)),   # per-head context
            pl.BlockSpec((1, tq, L), lambda qi, b, h: (b, qi, 0)),         # head-mean attention
        ],
        out_shape=[
            jax.ShapeDtypeStruct((B, H, L, D), jnp.bfloat16),
            jax.ShapeDtypeStruct((B, L, L), jnp.float32),
        ],
        compiler_params=pltpu.CompilerParams(
            dimension_semantics=("parallel", "parallel", "arbitrary"),
            vmem_limit_bytes=budget,
        ),
    )(query_up, key_up, value_up, rel_k, rel_v)
    return ctx, top_attn


# ----------------------------------- module glue -------------------------------------
def init_params(rng, model_dim, head_count, seq_len):
    dim_per_head = model_dim // head_count

    def lin_init(k, d_in, d_out):
        kw, kb = jax.random.split(k)
        bound = 1.0 / math.sqrt(d_in)
        # Weights stored bf16 (halves weight DMA on the mem-bound projections); bias kept f32.
        w = jax.random.uniform(kw, (d_in, d_out), jnp.float32, -bound, bound).astype(jnp.bfloat16)
        b = jax.random.uniform(kb, (d_out,), jnp.float32, -bound, bound)
        return w, b

    ks = jax.random.split(rng, 6)
    return {
        "linear_keys":   lin_init(ks[0], model_dim, head_count * dim_per_head),
        "linear_values": lin_init(ks[1], model_dim, head_count * dim_per_head),
        "linear_query":  lin_init(ks[2], model_dim, head_count * dim_per_head),
        "final_linear":  lin_init(ks[3], head_count * dim_per_head, model_dim),
        # Full [L, L, D] relative-position tables (what dot_product_attention_relative consumes),
        # stored bf16 to halve HBM/VMEM traffic.
        "rel_k": (0.02 * jax.random.normal(ks[4], (seq_len, seq_len, dim_per_head),
                                           jnp.float32)).astype(jnp.bfloat16),
        "rel_v": (0.02 * jax.random.normal(ks[5], (seq_len, seq_len, dim_per_head),
                                           jnp.float32)).astype(jnp.bfloat16),
    }


def multi_headed_attention_relative(params, key, value, query, head_count):
    """Forward pass of MultiHeadedAttentionRelative (mask=None, no caches, eval dropout)."""
    B, L, model_dim = key.shape
    dim_per_head = model_dim // head_count

    def proj_split_heads(x, wb):
        w, b = wb
        y = linear(x.reshape(B * L, model_dim), w, b, out_dtype=jnp.bfloat16)
        # _split_heads: [B, L, H*D] -> [B, H, L, D]  (layout needed for returned caches; the
        # transposes stay as XLA ops because D < 128 prevents folding them into BlockSpecs)
        return jnp.transpose(y.reshape(B, L, head_count, dim_per_head), (0, 2, 1, 3))

    key_up = proj_split_heads(key, params["linear_keys"])
    value_up = proj_split_heads(value, params["linear_values"])
    query_up = proj_split_heads(query, params["linear_query"])

    # TODO(synk): dropout on attention weights is stochastic; forward here matches eval mode.
    ctx, top_attn = relative_attention(query_up, key_up, value_up,
                                       params["rel_k"], params["rel_v"])

    # _combine_heads: [B, H, L, D] -> [B*L, H*D]  (bf16 feeds the final linear directly)
    context = jnp.transpose(ctx, (0, 2, 1, 3)).reshape(B * L, head_count * dim_per_head)
    wf, bf = params["final_linear"]
    output = linear(context, wf, bf, out_dtype=jnp.float32).reshape(B, L, model_dim)

    return output, top_attn, [key_up, value_up]


if __name__ == "__main__":
    B, L, model_dim, head_count = 2, 8, 32, 4

    root = jax.random.PRNGKey(0)
    kp, kk, kv, kq = jax.random.split(root, 4)
    params = init_params(kp, model_dim, head_count, L)

    key_in = jax.random.normal(kk, (B, L, model_dim), jnp.float32)
    value_in = jax.random.normal(kv, (B, L, model_dim), jnp.float32)
    query_in = jax.random.normal(kq, (B, L, model_dim), jnp.float32)

    fwd = jax.jit(multi_headed_attention_relative, static_argnums=(4,))
    output, top_attn, cache = fwd(params, key_in, value_in, query_in, head_count)
    jax.block_until_ready((output, top_attn, cache))

    assert output.shape == (B, L, model_dim)
    assert top_attn.shape == (B, L, L)
    assert cache[0].shape == (B, head_count, L, model_dim // head_count)
    assert cache[1].shape == (B, head_count, L, model_dim // head_count)
    assert bool(jnp.all(jnp.isfinite(output)))
    assert bool(jnp.all(jnp.isfinite(top_attn)))
    print("KERNEL_OK")
</pallas_src>

<mosaic_0001>
module attributes {stable_mosaic.version = 11 : i64} {
  func.func @_linear_kernel(%arg0: i32, %arg1: i32, %arg2: i32, %arg3: memref<16x32xf32, #tpu.memory_space<vmem>>, %arg4: memref<32x32xbf16, #tpu.memory_space<vmem>>, %arg5: memref<1x32xf32, #tpu.memory_space<vmem>>, %arg6: memref<16x32xbf16, #tpu.memory_space<vmem>>, %arg7: memref<16x32xf32, #tpu.memory_space<vmem>>) attributes {dimension_semantics = [#tpu.dimension_semantics<parallel>, #tpu.dimension_semantics<parallel>, #tpu.dimension_semantics<arbitrary>], iteration_bounds = array<i64: 1, 1, 1>, scalar_prefetch = 0 : i64, scratch_operands = 1 : i64, tpu.core_type = #tpu.core_type<tc>, window_params = [{transform_indices = @transform_0, window_bounds = array<i64: 16, 32>}, {transform_indices = @transform_1, window_bounds = array<i64: 32, 32>}, {transform_indices = @transform_2, window_bounds = array<i64: 1, 32>}, {transform_indices = @transform_3, window_bounds = array<i64: 16, 32>}]} {
    %c0_i32 = arith.constant 0 : i32
    %0 = arith.cmpi eq, %arg2, %c0_i32 : i32
    %1 = arith.extui %0 : i1 to i32
    %c0_i32_0 = arith.constant 0 : i32
    %2 = arith.cmpi ne, %1, %c0_i32_0 : i32
    scf.if %2 {
      %cst_10 = arith.constant 0.000000e+00 : f32
      %13 = vector.broadcast %cst_10 : f32 to vector<16x32xf32>
      %c0_11 = arith.constant 0 : index
      %c0_12 = arith.constant 0 : index
      %14 = vector.load %arg7[%c0_11, %c0_12] : memref<16x32xf32, #tpu.memory_space<vmem>>, vector<16x32xf32>
      tpu.vector_store %arg7[%c0_11, %c0_12], %13 {strides = array<i32>} : memref<16x32xf32, #tpu.memory_space<vmem>>, vector<16x32xf32>,
    } else {
    }
    %c0 = arith.constant 0 : index
    %c0_1 = arith.constant 0 : index
    %3 = vector.load %arg7[%c0, %c0_1] : memref<16x32xf32, #tpu.memory_space<vmem>>, vector<16x32xf32>
    %c0_2 = arith.constant 0 : index
    %c0_3 = arith.constant 0 : index
    %4 = vector.load %arg3[%c0_2, %c0_3] : memref<16x32xf32, #tpu.memory_space<vmem>>, vector<16x32xf32>
    %5 = arith.truncf %4 : vector<16x32xf32> to vector<16x32xbf16>
    %c0_4 = arith.constant 0 : index
    %c0_5 = arith.constant 0 : index
    %6 = vector.load %arg4[%c0_4, %c0_5] : memref<32x32xbf16, #tpu.memory_space<vmem>>, vector<32x32xbf16>
    %cst = arith.constant dense<0.000000e+00> : vector<16x32xf32>
    %7 = tpu.matmul %5, %6, %cst {dimension_numbers = #tpu.dot_dimension_numbers<[1], [0], [0], [1], [0, 0, 1, 1], [], []>} : vector<16x32xbf16>, vector<32x32xbf16>, vector<16x32xf32> -> vector<16x32xf32>
    %8 = arith.addf %3, %7 : vector<16x32xf32>
    %c0_6 = arith.constant 0 : index
    %c0_7 = arith.constant 0 : index
    %9 = vector.load %arg7[%c0_6, %c0_7] : memref<16x32xf32, #tpu.memory_space<vmem>>, vector<16x32xf32>
    tpu.vector_store %arg7[%c0_6, %c0_7], %8 {strides = array<i32>} : memref<16x32xf32, #tpu.memory_space<vmem>>, vector<16x32xf32>,
    %c0_i32_8 = arith.constant 0 : i32
    %10 = arith.cmpi eq, %arg2, %c0_i32_8 : i32
    %11 = arith.extui %10 : i1 to i32
    %c0_i32_9 = arith.constant 0 : i32
    %12 = arith.cmpi ne, %11, %c0_i32_9 : i32
    scf.if %12 {
      %c0_10 = arith.constant 0 : index
      %c0_11 = arith.constant 0 : index
      %13 = vector.load %arg7[%c0_10, %c0_11] : memref<16x32xf32, #tpu.memory_space<vmem>>, vector<16x32xf32>
      %c0_12 = arith.constant 0 : index
      %c0_13 = arith.constant 0 : index
      %14 = vector.load %arg5[%c0_12, %c0_13] : memref<1x32xf32, #tpu.memory_space<vmem>>, vector<1x32xf32>
      %15 = vector.broadcast %14 : vector<1x32xf32> to vector<16x32xf32>
      %16 = arith.addf %13, %15 : vector<16x32xf32>
      %17 = arith.truncf %16 : vector<16x32xf32> to vector<16x32xbf16>
      %c0_14 = arith.constant 0 : index
      %c0_15 = arith.constant 0 : index
      %18 = vector.load %arg6[%c0_14, %c0_15] : memref<16x32xbf16, #tpu.memory_space<vmem>>, vector<16x32xbf16>
      tpu.vector_store %arg6[%c0_14, %c0_15], %17 {strides = array<i32>} : memref<16x32xbf16, #tpu.memory_space<vmem>>, vector<16x32xbf16>,
    } else {
    }
    return
  }
  func.func @transform_0(%arg0: i32, %arg1: i32, %arg2: i32) -> (i32, i32) {
    %c0_i32 = arith.constant 0 : i32
    return %arg0, %arg2 : i32, i32
  }
  func.func @transform_1(%arg0: i32, %arg1: i32, %arg2: i32) -> (i32, i32) {
    %c0_i32 = arith.constant 0 : i32
    return %arg2, %arg1 : i32, i32
  }
  func.func @transform_2(%arg0: i32, %arg1: i32, %arg2: i32) -> (i32, i32) {
    %c0_i32 = arith.constant 0 : i32
    %c0_i32_0 = arith.constant 0 : i32
    return %c0_i32, %arg1 : i32, i32
  }
  func.func @transform_3(%arg0: i32, %arg1: i32, %arg2: i32) -> (i32, i32) {
    %c0_i32 = arith.constant 0 : i32
    return %arg0, %arg1 : i32, i32
  }
}

module attributes {stable_mosaic.version = 11 : i64} {
  func.func @_linear_kernel(%arg0: i32, %arg1: i32, %arg2: i32, %arg3: memref<16x32xbf16, #tpu.memory_space<vmem>>, %arg4: memref<32x32xbf16, #tpu.memory_space<vmem>>, %arg5: memref<1x32xf32, #tpu.memory_space<vmem>>, %arg6: memref<16x32xf32, #tpu.memory_space<vmem>>, %arg7: memref<16x32xf32, #tpu.memory_space<vmem>>) attributes {dimension_semantics = [#tpu.dimension_semantics<parallel>, #tpu.dimension_semantics<parallel>, #tpu.dimension_semantics<arbitrary>], iteration_bounds = array<i64: 1, 1, 1>, scalar_prefetch = 0 : i64, scratch_operands = 1 : i64, tpu.core_type = #tpu.core_type<tc>, window_params = [{transform_indices = @transform_0, window_bounds = array<i64: 16, 32>}, {transform_indices = @transform_1, window_bounds = array<i64: 32, 32>}, {transform_indices = @transform_2, window_bounds = array<i64: 1, 32>}, {transform_indices = @transform_3, window_bounds = array<i64: 16, 32>}]} {
    %c0_i32 = arith.constant 0 : i32
    %0 = arith.cmpi eq, %arg2, %c0_i32 : i32
    %1 = arith.extui %0 : i1 to i32
    %c0_i32_0 = arith.constant 0 : i32
    %2 = arith.cmpi ne, %1, %c0_i32_0 : i32
    scf.if %2 {
      %cst_10 = arith.constant 0.000000e+00 : f32
      %12 = vector.broadcast %cst_10 : f32 to vector<16x32xf32>
      %c0_11 = arith.constant 0 : index
      %c0_12 = arith.constant 0 : index
      %13 = vector.load %arg7[%c0_11, %c0_12] : memref<16x32xf32, #tpu.memory_space<vmem>>, vector<16x32xf32>
      tpu.vector_store %arg7[%c0_11, %c0_12], %12 {strides = array<i32>} : memref<16x32xf32, #tpu.memory_space<vmem>>, vector<16x32xf32>,
    } else {
    }
    %c0 = arith.constant 0 : index
    %c0_1 = arith.constant 0 : index
    %3 = vector.load %arg7[%c0, %c0_1] : memref<16x32xf32, #tpu.memory_space<vmem>>, vector<16x32xf32>
    %c0_2 = arith.constant 0 : index
    %c0_3 = arith.constant 0 : index
    %4 = vector.load %arg3[%c0_2, %c0_3] : memref<16x32xbf16, #tpu.memory_space<vmem>>, vector<16x32xbf16>
    %c0_4 = arith.constant 0 : index
    %c0_5 = arith.constant 0 : index
    %5 = vector.load %arg4[%c0_4, %c0_5] : memref<32x32xbf16, #tpu.memory_space<vmem>>, vector<32x32xbf16>
    %cst = arith.constant dense<0.000000e+00> : vector<16x32xf32>
    %6 = tpu.matmul %4, %5, %cst {dimension_numbers = #tpu.dot_dimension_numbers<[1], [0], [0], [1], [0, 0, 1, 1], [], []>} : vector<16x32xbf16>, vector<32x32xbf16>, vector<16x32xf32> -> vector<16x32xf32>
    %7 = arith.addf %3, %6 : vector<16x32xf32>
    %c0_6 = arith.constant 0 : index
    %c0_7 = arith.constant 0 : index
    %8 = vector.load %arg7[%c0_6, %c0_7] : memref<16x32xf32, #tpu.memory_space<vmem>>, vector<16x32xf32>
    tpu.vector_store %arg7[%c0_6, %c0_7], %7 {strides = array<i32>} : memref<16x32xf32, #tpu.memory_space<vmem>>, vector<16x32xf32>,
    %c0_i32_8 = arith.constant 0 : i32
    %9 = arith.cmpi eq, %arg2, %c0_i32_8 : i32
    %10 = arith.extui %9 : i1 to i32
    %c0_i32_9 = arith.constant 0 : i32
    %11 = arith.cmpi ne, %10, %c0_i32_9 : i32
    scf.if %11 {
      %c0_10 = arith.constant 0 : index
      %c0_11 = arith.constant 0 : index
      %12 = vector.load %arg7[%c0_10, %c0_11] : memref<16x32xf32, #tpu.memory_space<vmem>>, vector<16x32xf32>
      %c0_12 = arith.constant 0 : index
      %c0_13 = arith.constant 0 : index
      %13 = vector.load %arg5[%c0_12, %c0_13] : memref<1x32xf32, #tpu.memory_space<vmem>>, vector<1x32xf32>
      %14 = vector.broadcast %13 : vector<1x32xf32> to vector<16x32xf32>
      %15 = arith.addf %12, %14 : vector<16x32xf32>
      %c0_14 = arith.constant 0 : index
      %c0_15 = arith.constant 0 : index
      %16 = vector.load %arg6[%c0_14, %c0_15] : memref<16x32xf32, #tpu.memory_space<vmem>>, vector<16x32xf32>
      tpu.vector_store %arg6[%c0_14, %c0_15], %15 {strides = array<i32>} : memref<16x32xf32, #tpu.memory_space<vmem>>, vector<16x32xf32>,
    } else {
    }
    return
  }
  func.func @transform_0(%arg0: i32, %arg1: i32, %arg2: i32) -> (i32, i32) {
    %c0_i32 = arith.constant 0 : i32
    return %arg0, %arg2 : i32, i32
  }
  func.func @transform_1(%arg0: i32, %arg1: i32, %arg2: i32) -> (i32, i32) {
    %c0_i32 = arith.constant 0 : i32
    return %arg2, %arg1 : i32, i32
  }
  func.func @transform_2(%arg0: i32, %arg1: i32, %arg2: i32) -> (i32, i32) {
    %c0_i32 = arith.constant 0 : i32
    %c0_i32_0 = arith.constant 0 : i32
    return %c0_i32, %arg1 : i32, i32
  }
  func.func @transform_3(%arg0: i32, %arg1: i32, %arg2: i32) -> (i32, i32) {
    %c0_i32 = arith.constant 0 : i32
    return %arg0, %arg1 : i32, i32
  }
}

module attributes {stable_mosaic.version = 11 : i64} {
  func.func @_rel_attention_kernel(%arg0: i32, %arg1: i32, %arg2: i32, %arg3: memref<1x1x8x8xbf16, #tpu.memory_space<vmem>>, %arg4: memref<1x1x8x8xbf16, #tpu.memory_space<vmem>>, %arg5: memref<1x1x8x8xbf16, #tpu.memory_space<vmem>>, %arg6: memref<8x8x8xbf16, #tpu.memory_space<vmem>>, %arg7: memref<8x8x8xbf16, #tpu.memory_space<vmem>>, %arg8: memref<1x1x8x8xbf16, #tpu.memory_space<vmem>>, %arg9: memref<1x8x8xf32, #tpu.memory_space<vmem>>) attributes {dimension_semantics = [#tpu.dimension_semantics<parallel>, #tpu.dimension_semantics<parallel>, #tpu.dimension_semantics<arbitrary>], iteration_bounds = array<i64: 1, 2, 4>, scalar_prefetch = 0 : i64, scratch_operands = 0 : i64, tpu.core_type = #tpu.core_type<tc>, window_params = [{transform_indices = @transform_0, window_bounds = array<i64: 1, 1, 8, 8>}, {transform_indices = @transform_1, window_bounds = array<i64: 1, 1, 8, 8>}, {transform_indices = @transform_2, window_bounds = array<i64: 1, 1, 8, 8>}, {transform_indices = @transform_3, window_bounds = array<i64: 8, 8, 8>}, {transform_indices = @transform_4, window_bounds = array<i64: 8, 8, 8>}, {transform_indices = @transform_5, window_bounds = array<i64: 1, 1, 8, 8>}, {transform_indices = @transform_6, window_bounds = array<i64: 1, 8, 8>}]} {
    %c0 = arith.constant 0 : index
    %c0_0 = arith.constant 0 : index
    %c0_1 = arith.constant 0 : index
    %c0_2 = arith.constant 0 : index
    %0 = vector.load %arg3[%c0, %c0_0, %c0_1, %c0_2] : memref<1x1x8x8xbf16, #tpu.memory_space<vmem>>, vector<1x1x8x8xbf16>
    %1 = vector.shape_cast %0 : vector<1x1x8x8xbf16> to vector<8x8xbf16>
    %2 = arith.extf %1 : vector<8x8xbf16> to vector<8x8xf32>
    %cst = arith.constant 0.353553385 : f32
    %3 = vector.broadcast %cst : f32 to vector<8x8xf32>
    %4 = arith.mulf %2, %3 : vector<8x8xf32>
    %5 = arith.truncf %4 : vector<8x8xf32> to vector<8x8xbf16>
    %c0_3 = arith.constant 0 : index
    %c0_4 = arith.constant 0 : index
    %c0_5 = arith.constant 0 : index
    %c0_6 = arith.constant 0 : index
    %6 = vector.load %arg4[%c0_3, %c0_4, %c0_5, %c0_6] : memref<1x1x8x8xbf16, #tpu.memory_space<vmem>>, vector<1x1x8x8xbf16>
    %7 = vector.shape_cast %6 : vector<1x1x8x8xbf16> to vector<8x8xbf16>
    %c0_7 = arith.constant 0 : index
    %c0_8 = arith.constant 0 : index
    %c0_9 = arith.constant 0 : index
    %c0_10 = arith.constant 0 : index
    %8 = vector.load %arg5[%c0_7, %c0_8, %c0_9, %c0_10] : memref<1x1x8x8xbf16, #tpu.memory_space<vmem>>, vector<1x1x8x8xbf16>
    %9 = vector.shape_cast %8 : vector<1x1x8x8xbf16> to vector<8x8xbf16>
    %c0_11 = arith.constant 0 : index
    %c0_12 = arith.constant 0 : index
    %c0_13 = arith.constant 0 : index
    %10 = vector.load %arg6[%c0_11, %c0_12, %c0_13] : memref<8x8x8xbf16, #tpu.memory_space<vmem>>, vector<8x8x8xbf16>
    %c0_14 = arith.constant 0 : index
    %c0_15 = arith.constant 0 : index
    %c0_16 = arith.constant 0 : index
    %11 = vector.load %arg7[%c0_14, %c0_15, %c0_16] : memref<8x8x8xbf16, #tpu.memory_space<vmem>>, vector<8x8x8xbf16>
    %cst_17 = arith.constant dense<0.000000e+00> : vector<8x8xf32>
    %12 = tpu.matmul %5, %7, %cst_17 {dimension_numbers = #tpu.dot_dimension_numbers<[1], [1], [0], [0], [0, 0, 1, 0], [], []>} : vector<8x8xbf16>, vector<8x8xbf16>, vector<8x8xf32> -> vector<8x8xf32>
    %13 = vector.shape_cast %4 : vector<8x8xf32> to vector<8x1x8xf32>
    %14 = arith.extf %10 : vector<8x8x8xbf16> to vector<8x8x8xf32>
    %15 = vector.broadcast %13 : vector<8x1x8xf32> to vector<8x8x8xf32>
    %16 = arith.mulf %15, %14 : vector<8x8x8xf32>
    %cst_18 = arith.constant dense<0.000000e+00> : vector<8x8xf32>
    %17 = vector.multi_reduction <add>, %16, %cst_18 [2] : vector<8x8x8xf32> to vector<8x8xf32>
    %18 = arith.addf %12, %17 : vector<8x8xf32>
    %cst_19 = arith.constant dense<0xFF800000> : vector<8xf32>
    %19 = vector.multi_reduction <maximumf>, %18, %cst_19 [1] : vector<8x8xf32> to vector<8xf32>
    %20 = vector.shape_cast %19 : vector<8xf32> to vector<8x1xf32>
    %21 = vector.broadcast %20 : vector<8x1xf32> to vector<8x8xf32>
    %22 = arith.subf %18, %21 : vector<8x8xf32>
    %23 = math.exp %22 : vector<8x8xf32>
    %cst_20 = arith.constant dense<0.000000e+00> : vector<8xf32>
    %24 = vector.multi_reduction <add>, %23, %cst_20 [1] : vector<8x8xf32> to vector<8xf32>
    %25 = vector.shape_cast %24 : vector<8xf32> to vector<8x1xf32>
    %26 = vector.broadcast %25 : vector<8x1xf32> to vector<8x8xf32>
    %27 = arith.divf %23, %26 : vector<8x8xf32>
    %28 = arith.truncf %27 : vector<8x8xf32> to vector<8x8xbf16>
    %cst_21 = arith.constant dense<0.000000e+00> : vector<8x8xf32>
    %29 = tpu.matmul %28, %9, %cst_21 {dimension_numbers = #tpu.dot_dimension_numbers<[1], [0], [0], [1], [0, 0, 1, 1], [], []>} : vector<8x8xbf16>, vector<8x8xbf16>, vector<8x8xf32> -> vector<8x8xf32>
    %30 = vector.shape_cast %27 : vector<8x8xf32> to vector<8x8x1xf32>
    %31 = arith.extf %11 : vector<8x8x8xbf16> to vector<8x8x8xf32>
    %32 = vector.broadcast %30 : vector<8x8x1xf32> to vector<8x8x8xf32>
    %33 = arith.mulf %32, %31 : vector<8x8x8xf32>
    %cst_22 = arith.constant dense<0.000000e+00> : vector<8x8xf32>
    %34 = vector.multi_reduction <add>, %33, %cst_22 [1] : vector<8x8x8xf32> to vector<8x8xf32>
    %35 = arith.addf %29, %34 : vector<8x8xf32>
    %36 = arith.truncf %35 : vector<8x8xf32> to vector<8x8xbf16>
    %c0_23 = arith.constant 0 : index
    %c0_24 = arith.constant 0 : index
    %c0_25 = arith.constant 0 : index
    %c0_26 = arith.constant 0 : index
    %37 = vector.load %arg8[%c0_23, %c0_24, %c0_25, %c0_26] : memref<1x1x8x8xbf16, #tpu.memory_space<vmem>>, vector<1x1x8x8xbf16>
    %38 = vector.shape_cast %37 : vector<1x1x8x8xbf16> to vector<8x8xbf16>
    %39 = vector.shape_cast %36 : vector<8x8xbf16> to vector<1x1x8x8xbf16>
    tpu.vector_store %arg8[%c0_23, %c0_24, %c0_25, %c0_26], %39 {strides = array<i32>} : memref<1x1x8x8xbf16, #tpu.memory_space<vmem>>, vector<1x1x8x8xbf16>,
    %c0_i32 = arith.constant 0 : i32
    %40 = arith.cmpi eq, %arg2, %c0_i32 : i32
    %41 = arith.extui %40 : i1 to i32
    %c0_i32_27 = arith.constant 0 : i32
    %42 = arith.cmpi ne, %41, %c0_i32_27 : i32
    scf.if %42 {
      %cst_35 = arith.constant 0.000000e+00 : f32
      %50 = vector.broadcast %cst_35 : f32 to vector<1x8x8xf32>
      %c0_36 = arith.constant 0 : index
      %c0_37 = arith.constant 0 : index
      %c0_38 = arith.constant 0 : index
      %51 = vector.load %arg9[%c0_36, %c0_37, %c0_38] : memref<1x8x8xf32, #tpu.memory_space<vmem>>, vector<1x8x8xf32>
      tpu.vector_store %arg9[%c0_36, %c0_37, %c0_38], %50 {strides = array<i32>} : memref<1x8x8xf32, #tpu.memory_space<vmem>>, vector<1x8x8xf32>,
    } else {
    }
    %c0_28 = arith.constant 0 : index
    %c0_29 = arith.constant 0 : index
    %c0_30 = arith.constant 0 : index
    %43 = vector.load %arg9[%c0_28, %c0_29, %c0_30] : memref<1x8x8xf32, #tpu.memory_space<vmem>>, vector<1x8x8xf32>
    %44 = vector.shape_cast %27 : vector<8x8xf32> to vector<1x8x8xf32>
    %45 = arith.addf %43, %44 : vector<1x8x8xf32>
    %c0_31 = arith.constant 0 : index
    %c0_32 = arith.constant 0 : index
    %c0_33 = arith.constant 0 : index
    %46 = vector.load %arg9[%c0_31, %c0_32, %c0_33] : memref<1x8x8xf32, #tpu.memory_space<vmem>>, vector<1x8x8xf32>
    tpu.vector_store %arg9[%c0_31, %c0_32, %c0_33], %45 {strides = array<i32>} : memref<1x8x8xf32, #tpu.memory_space<vmem>>, vector<1x8x8xf32>,
    %c3_i32 = arith.constant 3 : i32
    %47 = arith.cmpi eq, %arg2, %c3_i32 : i32
    %48 = arith.extui %47 : i1 to i32
    %c0_i32_34 = arith.constant 0 : i32
    %49 = arith.cmpi ne, %48, %c0_i32_34 : i32
    scf.if %49 {
      %c0_35 = arith.constant 0 : index
      %c0_36 = arith.constant 0 : index
      %c0_37 = arith.constant 0 : index
      %50 = vector.load %arg9[%c0_35, %c0_36, %c0_37] : memref<1x8x8xf32, #tpu.memory_space<vmem>>, vector<1x8x8xf32>
      %cst_38 = arith.constant 2.500000e-01 : f32
      %51 = vector.broadcast %cst_38 : f32 to vector<1x8x8xf32>
      %52 = arith.mulf %50, %51 : vector<1x8x8xf32>
      %c0_39 = arith.constant 0 : index
      %c0_40 = arith.constant 0 : index
      %c0_41 = arith.constant 0 : index
      %53 = vector.load %arg9[%c0_39, %c0_40, %c0_41] : memref<1x8x8xf32, #tpu.memory_space<vmem>>, vector<1x8x8xf32>
      tpu.vector_store %arg9[%c0_39, %c0_40, %c0_41], %52 {strides = array<i32>} : memref<1x8x8xf32, #tpu.memory_space<vmem>>, vector<1x8x8xf32>,
    } else {
    }
    return
  }
  func.func @transform_0(%arg0: i32, %arg1: i32, %arg2: i32) -> (i32, i32, i32, i32) {
    %c0_i32 = arith.constant 0 : i32
    %c0_i32_0 = arith.constant 0 : i32
    return %arg1, %arg2, %arg0, %c0_i32 : i32, i32, i32, i32
  }
  func.func @transform_1(%arg0: i32, %arg1: i32, %arg2: i32) -> (i32, i32, i32, i32) {
    %c0_i32 = arith.constant 0 : i32
    %c0_i32_0 = arith.constant 0 : i32
    %c0_i32_1 = arith.constant 0 : i32
    return %arg1, %arg2, %c0_i32, %c0_i32_0 : i32, i32, i32, i32
  }
  func.func @transform_2(%arg0: i32, %arg1: i32, %arg2: i32) -> (i32, i32, i32, i32) {
    %c0_i32 = arith.constant 0 : i32
    %c0_i32_0 = arith.constant 0 : i32
    %c0_i32_1 = arith.constant 0 : i32
    return %arg1, %arg2, %c0_i32, %c0_i32_0 : i32, i32, i32, i32
  }
  func.func @transform_3(%arg0: i32, %arg1: i32, %arg2: i32) -> (i32, i32, i32) {
    %c0_i32 = arith.constant 0 : i32
    %c0_i32_0 = arith.constant 0 : i32
    %c0_i32_1 = arith.constant 0 : i32
    return %arg0, %c0_i32, %c0_i32_0 : i32, i32, i32
  }
  func.func @transform_4(%arg0: i32, %arg1: i32, %arg2: i32) -> (i32, i32, i32) {
    %c0_i32 = arith.constant 0 : i32
    %c0_i32_0 = arith.constant 0 : i32
    %c0_i32_1 = arith.constant 0 : i32
    return %arg0, %c0_i32, %c0_i32_0 : i32, i32, i32
  }
  func.func @transform_5(%arg0: i32, %arg1: i32, %arg2: i32) -> (i32, i32, i32, i32) {
    %c0_i32 = arith.constant 0 : i32
    %c0_i32_0 = arith.constant 0 : i32
    return %arg1, %arg2, %arg0, %c0_i32 : i32, i32, i32, i32
  }
  func.func @transform_6(%arg0: i32, %arg1: i32, %arg2: i32) -> (i32, i32, i32) {
    %c0_i32 = arith.constant 0 : i32
    %c0_i32_0 = arith.constant 0 : i32
    return %arg1, %arg0, %c0_i32 : i32, i32, i32
  }
}

</mosaic_0001>

<llo_original>
// kernel: multi_headed_attention_relative.9
$region0: #{multi_headed_attention_relative.9}
  #allocation0 [shape = 'u32[]', space=smem, size = 0x4, offset = 0x4, fixed_abs, tag = 'smem constant byte address 0x4 - core index']
  #allocation1 [shape = 'u32[144,128]{1,0:T(1,128)}', space=vmem, size = 0x12000, scoped, tag = 'internal scratch']
  #allocation2 [shape = 'f32[16,32]{1,0:T(8,128)}', space=vmem, size = 0x2000, scoped, tag = 'scratch operand']
  %s0 = inlined_call_operand.vmem [shape: bf16[16,32], index: 0, kind: input, shape index: {}]
  %s1 = inlined_call_operand.vmem [shape: bf16[32,32], index: 1, kind: input, shape index: {}]
  %s2 = inlined_call_operand.vmem [shape: f32[1,32], index: 2, kind: input, shape index: {}]
  %s3 = inlined_call_operand.hbm [shape: f32[16,32], index: 3, kind: output, shape index: {}]
  %s4 = sld [smem:[#allocation0]]
  $region30: #{multi_headed_attention_relative.9} parent=0
    _
  %s6 = ssub.s32 1, %s4
  %s7 = scalar_select 0, %s6, %s4
  $region1: #{multi_headed_attention_relative.9} parent=0
    #allocation3 [shape = 'u8[8192]{0}', space=vmem, size = 0x2000, scoped, tag = 'output window, operand 0, single buffered']
    #allocation4 [shape = 's32[1]{0}', space=sflag, size = 0x4, scoped, tag = 'scoped memory for multi_headed_attention_relative.9']
    %8 = vsyncpa [#allocation4], 0
    // Predicated region
    $region2: #{multi_headed_attention_relative.9} parent=1 // pred_check
      _
    $region3: #{multi_headed_attention_relative.9} parent=1 // pred_check_branch
      %10 = sbr.rel (0) target = $region5
    $region4: #{multi_headed_attention_relative.9} parent=1 // pred_region
      _
    $region5: #{multi_headed_attention_relative.9} parent=1 // pred_fallthru
      _
    // Predicated region
    $region6: #{multi_headed_attention_relative.9} parent=1 // pred_check
      _
    $region7: #{multi_headed_attention_relative.9} parent=1 // pred_check_branch
      %12 = sbr.rel (0) target = $region9
    $region8: #{multi_headed_attention_relative.9} parent=1 // pred_region
      _
    $region9: #{multi_headed_attention_relative.9} parent=1 // pred_fallthru
      _
    // Predicated region
    $region10: #{multi_headed_attention_relative.9} parent=1 // pred_check
      _
    $region11: #{multi_headed_attention_relative.9} parent=1 // pred_check_branch
      %14 = sbr.rel (0) target = $region13
    $region12: #{multi_headed_attention_relative.9} parent=1 // pred_region
      _
    $region13: #{multi_headed_attention_relative.9} parent=1 // pred_fallthru
      _
    %p16 = scmp.eq.s32.totalorder 0, 0
    // Predicated region
    $region14: #{multi_headed_attention_relative.9} parent=1 // pred_check
      %p17 = pneg %p16
    $region15: #{multi_headed_attention_relative.9} parent=1 // pred_check_branch
      %19 = sbr.rel (%p17) target = $region17
    $region16: #{multi_headed_attention_relative.9} parent=1 // pred_region
      %vm20 = vcmask 261120
      %21 = vst.msk [vmem:[#allocation2] sm:$0xff] %vm20, 0.0
      %22 = vst.msk [vmem:[#allocation2 + $0x8] sm:$0xff] %vm20, 0.0
    $region17: #{multi_headed_attention_relative.9} parent=1 // pred_fallthru
      _
    %v23 = vld [vmem:[#allocation2] sm:$0xff]
    %v24 = vld [vmem:[#allocation2 + $0x8] sm:$0xff]
    %v25 = vld [vmem:[%s0] sm:$0xf]
    %v26 = vld [vmem:[%s0 + $0x4] sm:$0xf]
    %v27 = vld [vmem:[%s1] sm:$0xf]
    %v28 = vld [vmem:[%s1 + $0x4] sm:$0xf]
    %v29 = vld [vmem:[%s1 + $0x8] sm:$0xf]
    %v30 = vld [vmem:[%s1 + $0xc] sm:$0xf]
    %v33 = vunpack.c.l.b16 %v25
    %v34 = vunpack.c.l.b16 %v26
    %v35 = vpack.c.b16 %v34, %v33
    %v40 = vunpack.c.l.b16 %v27
    %v41 = vunpack.c.l.b16 %v28
    %v42 = vunpack.c.l.b16 %v29
    %v43 = vunpack.c.l.b16 %v30
    %v44 = vpack.c.b16 %v41, %v40
    %v45 = vpack.c.b16 %v43, %v42
    %vm48 = vcmask 261120
    %v50 = vsel %vm48, %v35, 0
    %52 = vmatprep.subr.bf16.mxu0 0
    %53 = vmatpush1.bf16.msra.mxu0 %v44
    %54 = vmatprep.subr.bf16.mxu0 0
    %55 = vmatpush1.bf16.msra.mxu0 %v45
    %56 = vmatprep.subr.bf16.mxu0 0
    %57 = vmatpush1.bf16.msra.mxu0 0
    %58 = vmatprep.subr.bf16.mxu0 0
    %59 = vmatpush1.bf16.msra.mxu0 0
    %60 = vmatprep.subr.bf16.mxu0 0
    %61 = vmatpush1.bf16.msra.mxu0 0
    %62 = vmatprep.subr.bf16.mxu0 0
    %63 = vmatpush1.bf16.msra.mxu0 0
    %64 = vmatprep.subr.bf16.mxu0 0
    %65 = vmatpush1.bf16.msra.mxu0 0
    %66 = vmatprep.subr.bf16.mxu0 0
    %67 = vmatpush1.bf16.msra.mxu0 0
    %68 = vmatprep.subr.bf16.mxu0 0
    %69 = vmatpush1.bf16.msra.mxu0 0
    %70 = vmatprep.subr.bf16.mxu0 0
    %71 = vmatpush1.bf16.msra.mxu0 0
    %72 = vmatprep.subr.bf16.mxu0 0
    %73 = vmatpush1.bf16.msra.mxu0 0
    %74 = vmatprep.subr.bf16.mxu0 0
    %75 = vmatpush1.bf16.msra.mxu0 0
    %76 = vmatprep.subr.bf16.mxu0 0
    %77 = vmatpush1.bf16.msra.mxu0 0
    %78 = vmatprep.subr.bf16.mxu0 0
    %79 = vmatpush1.bf16.msra.mxu0 0
    %80 = vmatprep.subr.bf16.mxu0 0
    %81 = vmatpush1.bf16.msra.mxu0 0
    %82 = vmatprep.subr.bf16.mxu0 0
    %83 = vmatpush1.bf16.msra.mxu0 0
    %84 = vmatprep.mubr.bf16.mxu0 0
    %85 = vmatmul.mubr.bf16.gmra.mrb[0].mxu0 %v50
    %v86 = vpop.f32.mrb[0].mxu0
    %v87 = vadd.f32 0.0, %v86
    %v88 = vpop.f32.mrb[0].mxu0
    %v89 = vpop.f32.mrb[0].mxu0
    %v90 = vadd.f32 0.0, %v89
    %v91 = vpop.f32.mrb[0].mxu0
    %92 = vdwg.mxu0
    %v93 = vadd.f32 %v23, %v87
    %v94 = vadd.f32 %v24, %v90
    %95 = vst.msk [vmem:[#allocation2] sm:$0xff] %vm48, %v93
    %96 = vst.msk [vmem:[#allocation2 + $0x8] sm:$0xff] %vm48, %v94
    // Predicated region
    $region18: #{multi_headed_attention_relative.9} parent=1 // pred_check
      %p97 = pneg %p16
    $region19: #{multi_headed_attention_relative.9} parent=1 // pred_check_branch
      %99 = sbr.rel (%p97) target = $region21
    $region20: #{multi_headed_attention_relative.9} parent=1 // pred_region
      %v100 = vld [vmem:[#allocation2] sm:$0xff]
      %v101 = vld [vmem:[#allocation2 + $0x8] sm:$0xff]
      %v102 = vld [vmem:[%s2] sm:$0x1]
      %v104 = vlaneseq
      %v105 = vshrl.u32 %v104, 7
      %v106 = vsub.s32 0, %v105
      %v107 = vrot.slane %v102, %v106
      %v109 = vadd.f32 %v100, %v107
      %v110 = vadd.f32 %v101, %v107
      %111 = vst.msk [vmem:[#allocation3] sm:$0xff] %vm48, %v109
      %112 = vst.msk [vmem:[#allocation3 + $0x8] sm:$0xff] %vm48, %v110
    $region21: #{multi_headed_attention_relative.9} parent=1 // pred_fallthru
      _
    // Predicated region
    $region22: #{multi_headed_attention_relative.9} parent=1 // pred_check
      _
    $region23: #{multi_headed_attention_relative.9} parent=1 // pred_check_branch
      %114 = sbr.rel (0) target = $region25
    $region24: #{multi_headed_attention_relative.9} parent=1 // pred_region
      %s116 = ssub.s32 256, 256
      %117 = vsyncadd [#allocation4], %s116
      %s118 = sshll.u32 [#allocation3], 4
      %s119 = int_to_ptr.vmem [resolvable:$true] %s118
      %124 = dma.vmem_to_hbm [thread:$0]  %s119, 256, %s3, [#allocation4], 128, 128, 8
    $region25: #{multi_headed_attention_relative.9} parent=1 // pred_fallthru
      _
    // Predicated region
    $region26: #{multi_headed_attention_relative.9} parent=1 // pred_check
      _
    $region27: #{multi_headed_attention_relative.9} parent=1 // pred_check_branch
      %126 = sbr.rel (0) target = $region29
    $region28: #{multi_headed_attention_relative.9} parent=1 // pred_region
      %127 = dma.done [#allocation4], 256
    $region29: #{multi_headed_attention_relative.9} parent=1 // pred_fallthru
      _
    %128 = vsyncpa [#allocation4], 1

// kernel: multi_headed_attention_relative.5
$region0: #{multi_headed_attention_relative.5}
  #allocation0 [shape = 'u32[]', space=smem, size = 0x4, offset = 0x4, fixed_abs, tag = 'smem constant byte address 0x4 - core index']
  #allocation1 [shape = 'u32[144,128]{1,0:T(1,128)}', space=vmem, size = 0x12000, scoped, tag = 'internal scratch']
  #allocation2 [shape = 'f32[16,32]{1,0:T(8,128)}', space=vmem, size = 0x2000, scoped, tag = 'scratch operand']
  %s0 = inlined_call_operand.vmem [shape: f32[16,32], index: 0, kind: input, shape index: {}]
  %s1 = inlined_call_operand.vmem [shape: bf16[32,32], index: 1, kind: input, shape index: {}]
  %s2 = inlined_call_operand.vmem [shape: f32[1,32], index: 2, kind: input, shape index: {}]
  %s3 = inlined_call_operand.vmem [shape: bf16[16,32], index: 3, kind: output, shape index: {}]
  %s4 = sld [smem:[#allocation0]]
  $region30: #{multi_headed_attention_relative.5} parent=0
    _
  %s6 = ssub.s32 1, %s4
  %s7 = scalar_select 0, %s6, %s4
  // Predicated region
  $region2: #{multi_headed_attention_relative.5} parent=0 // pred_check
    _
  $region3: #{multi_headed_attention_relative.5} parent=0 // pred_check_branch
    %9 = sbr.rel (0) target = $region5
  $region4: #{multi_headed_attention_relative.5} parent=0 // pred_region
    _
  $region5: #{multi_headed_attention_relative.5} parent=0 // pred_fallthru
    _
  // Predicated region
  $region6: #{multi_headed_attention_relative.5} parent=0 // pred_check
    _
  $region7: #{multi_headed_attention_relative.5} parent=0 // pred_check_branch
    %11 = sbr.rel (0) target = $region9
  $region8: #{multi_headed_attention_relative.5} parent=0 // pred_region
    _
  $region9: #{multi_headed_attention_relative.5} parent=0 // pred_fallthru
    _
  // Predicated region
  $region10: #{multi_headed_attention_relative.5} parent=0 // pred_check
    _
  $region11: #{multi_headed_attention_relative.5} parent=0 // pred_check_branch
    %13 = sbr.rel (0) target = $region13
  $region12: #{multi_headed_attention_relative.5} parent=0 // pred_region
    _
  $region13: #{multi_headed_attention_relative.5} parent=0 // pred_fallthru
    _
  %p15 = scmp.eq.s32.totalorder 0, 0
  // Predicated region
  $region14: #{multi_headed_attention_relative.5} parent=0 // pred_check
    %p16 = pneg %p15
  $region15: #{multi_headed_attention_relative.5} parent=0 // pred_check_branch
    %18 = sbr.rel (%p16) target = $region17
  $region16: #{multi_headed_attention_relative.5} parent=0 // pred_region
    %vm19 = vcmask 261120
    %20 = vst.msk [vmem:[#allocation2] sm:$0xff] %vm19, 0.0
    %21 = vst.msk [vmem:[#allocation2 + $0x8] sm:$0xff] %vm19, 0.0
  $region17: #{multi_headed_attention_relative.5} parent=0 // pred_fallthru
    _
  %v22 = vld [vmem:[#allocation2] sm:$0xff]
  %v23 = vld [vmem:[#allocation2 + $0x8] sm:$0xff]
  %v24 = vld [vmem:[%s0] sm:$0xff]
  %v25 = vld [vmem:[%s0 + $0x8] sm:$0xff]
  %v26 = vpack.c.bf16 %v25, %v24
  %v27 = vld [vmem:[%s1] sm:$0xf]
  %v28 = vld [vmem:[%s1 + $0x4] sm:$0xf]
  %v29 = vld [vmem:[%s1 + $0x8] sm:$0xf]
  %v30 = vld [vmem:[%s1 + $0xc] sm:$0xf]
  %v35 = vunpack.c.l.b16 %v27
  %v36 = vunpack.c.l.b16 %v28
  %v37 = vunpack.c.l.b16 %v29
  %v38 = vunpack.c.l.b16 %v30
  %v39 = vpack.c.b16 %v36, %v35
  %v40 = vpack.c.b16 %v38, %v37
  %vm43 = vcmask 261120
  %v45 = vsel %vm43, %v26, 0
  %47 = vmatprep.subr.bf16.mxu0 0
  %48 = vmatpush1.bf16.msra.mxu0 %v39
  %49 = vmatprep.subr.bf16.mxu0 0
  %50 = vmatpush1.bf16.msra.mxu0 %v40
  %51 = vmatprep.subr.bf16.mxu0 0
  %52 = vmatpush1.bf16.msra.mxu0 0
  %53 = vmatprep.subr.bf16.mxu0 0
  %54 = vmatpush1.bf16.msra.mxu0 0
  %55 = vmatprep.subr.bf16.mxu0 0
  %56 = vmatpush1.bf16.msra.mxu0 0
  %57 = vmatprep.subr.bf16.mxu0 0
  %58 = vmatpush1.bf16.msra.mxu0 0
  %59 = vmatprep.subr.bf16.mxu0 0
  %60 = vmatpush1.bf16.msra.mxu0 0
  %61 = vmatprep.subr.bf16.mxu0 0
  %62 = vmatpush1.bf16.msra.mxu0 0
  %63 = vmatprep.subr.bf16.mxu0 0
  %64 = vmatpush1.bf16.msra.mxu0 0
  %65 = vmatprep.subr.bf16.mxu0 0
  %66 = vmatpush1.bf16.msra.mxu0 0
  %67 = vmatprep.subr.bf16.mxu0 0
  %68 = vmatpush1.bf16.msra.mxu0 0
  %69 = vmatprep.subr.bf16.mxu0 0
  %70 = vmatpush1.bf16.msra.mxu0 0
  %71 = vmatprep.subr.bf16.mxu0 0
  %72 = vmatpush1.bf16.msra.mxu0 0
  %73 = vmatprep.subr.bf16.mxu0 0
  %74 = vmatpush1.bf16.msra.mxu0 0
  %75 = vmatprep.subr.bf16.mxu0 0
  %76 = vmatpush1.bf16.msra.mxu0 0
  %77 = vmatprep.subr.bf16.mxu0 0
  %78 = vmatpush1.bf16.msra.mxu0 0
  %79 = vmatprep.mubr.bf16.mxu0 0
  %80 = vmatmul.mubr.bf16.gmra.mrb[0].mxu0 %v45
  %v81 = vpop.f32.mrb[0].mxu0
  %v82 = vadd.f32 0.0, %v81
  %v83 = vpop.f32.mrb[0].mxu0
  %v84 = vpop.f32.mrb[0].mxu0
  %v85 = vadd.f32 0.0, %v84
  %v86 = vpop.f32.mrb[0].mxu0
  %87 = vdwg.mxu0
  %v88 = vadd.f32 %v22, %v82
  %v89 = vadd.f32 %v23, %v85
  %90 = vst.msk [vmem:[#allocation2] sm:$0xff] %vm43, %v88
  %91 = vst.msk [vmem:[#allocation2 + $0x8] sm:$0xff] %vm43, %v89
  // Predicated region
  $region18: #{multi_headed_attention_relative.5} parent=0 // pred_check
    %p92 = pneg %p15
  $region19: #{multi_headed_attention_relative.5} parent=0 // pred_check_branch
    %94 = sbr.rel (%p92) target = $region21
  $region20: #{multi_headed_attention_relative.5} parent=0 // pred_region
    %v95 = vld [vmem:[#allocation2] sm:$0xff]
    %v96 = vld [vmem:[#allocation2 + $0x8] sm:$0xff]
    %v97 = vld [vmem:[%s2] sm:$0x1]
    %v99 = vlaneseq
    %v100 = vshrl.u32 %v99, 7
    %v101 = vsub.s32 0, %v100
    %v102 = vrot.slane %v97, %v101
    %v104 = vadd.f32 %v95, %v102
    %v105 = vadd.f32 %v96, %v102
    %v106 = vpack.c.bf16 %v105, %v104
    %v108 = vunpack.c.l.b16 %v106
    %v109 = vunpack.c.h.b16 %v106
    %v110 = vpack.c.b16 %v108, %v108
    %v111 = vpack.c.b16 %v109, %v109
    %vm114 = vcmask 257024
    %115 = vst.msk [vmem:[%s3] sm:$0xf] %vm114, %v110
    %116 = vst.msk [vmem:[%s3 + $0x4] sm:$0xf] %vm114, %v111
  $region21: #{multi_headed_attention_relative.5} parent=0 // pred_fallthru
    _
  // Predicated region
  $region22: #{multi_headed_attention_relative.5} parent=0 // pred_check
    _
  $region23: #{multi_headed_attention_relative.5} parent=0 // pred_check_branch
    %118 = sbr.rel (0) target = $region25
  $region24: #{multi_headed_attention_relative.5} parent=0 // pred_region
    _
  $region25: #{multi_headed_attention_relative.5} parent=0 // pred_fallthru
    _
  // Predicated region
  $region26: #{multi_headed_attention_relative.5} parent=0 // pred_check
    _
  $region27: #{multi_headed_attention_relative.5} parent=0 // pred_check_branch
    %120 = sbr.rel (0) target = $region29
  $region28: #{multi_headed_attention_relative.5} parent=0 // pred_region
    _
  $region29: #{multi_headed_attention_relative.5} parent=0 // pred_fallthru
    _

// kernel: multi_headed_attention_relative.8
$region0: #{multi_headed_attention_relative.8}
  #allocation0 [shape = 'u32[]', space=smem, size = 0x4, offset = 0x4, fixed_abs, tag = 'smem constant byte address 0x4 - core index']
  #allocation1 [shape = 'u32[144,128]{1,0:T(1,128)}', space=vmem, size = 0x12000, scoped, tag = 'internal scratch']
  %s0 = inlined_call_operand.vmem [shape: bf16[2,4,8,8], index: 0, kind: input, shape index: {}]
  %s1 = inlined_call_operand.vmem [shape: bf16[2,4,8,8], index: 1, kind: input, shape index: {}]
  %s2 = inlined_call_operand.vmem [shape: bf16[2,4,8,8], index: 2, kind: input, shape index: {}]
  %s3 = inlined_call_operand.vmem [shape: bf16[8,8,8], index: 3, kind: input, shape index: {}]
  %s4 = inlined_call_operand.vmem [shape: bf16[8,8,8], index: 4, kind: input, shape index: {}]
  %s5 = inlined_call_operand.vmem [shape: bf16[2,4,8,8], index: 5, kind: output, shape index: {0}]
  %s6 = inlined_call_operand.hbm [shape: f32[2,8,8], index: 6, kind: output, shape index: {1}]
  %7 = xla_tuple %s5, %s6
  %s8 = sld [smem:[#allocation0]]
  $region69: #{multi_headed_attention_relative.8} parent=0
    _
  %s10 = ssub.s32 1, %s8
  %s11 = scalar_select 0, %s10, %s8
  $region1: #{multi_headed_attention_relative.8} parent=0
    #allocation2 [shape = 'u8[8192]{0}', space=vmem, size = 0x2000, scoped, tag = 'output window, operand 1']
    #allocation3 [shape = 's32[2]{0}', space=sflag, size = 0x8, scoped, tag = 'scoped memory for multi_headed_attention_relative.8']
    %12 = vsyncpa [#allocation3], 0
    %s13 = scalar_lea.sflag [#allocation3], 1
    %14 = vsyncpa %s13, 0
    loop: start=0, step=1, limit=10
    $region2: #{multi_headed_attention_relative.8} parent=1 // loop_pre_header
      _
    $region3: #{multi_headed_attention_relative.8} parent=1 // loop_header
      %s16 = sphi 0, %s20
      %p17 = scmp.ge.s32.totalorder %s16, 10
      %s23 = sphi 0, %s42
      %s24 = sphi 0, %s38
      %s25 = sphi 0, %s34
      %s26 = sphi 0, %s23
      %s27 = sphi 0, %s24
      %s28 = sphi 0, %s25
      %s29 = sphi 0, %s26
      %s30 = sphi 0, %s27
      %s31 = sphi 0, %s28
      %s49 = sphi 0, %s51
      %s52 = sphi 0, %s49
      %s53 = sphi 0, %s52
      %s69 = sphi 0, %s53
      %s77 = sphi 0, %s79
      %s80 = sphi 0, %s77
      %s81 = sphi 0, %s80
      %s97 = sphi 0, %s81
      %s105 = sphi 0, %s107
      %s108 = sphi 0, %s105
      %s109 = sphi 0, %s108
      %s125 = sphi 0, %s109
      %s131 = sphi 0, %s133
      %s134 = sphi 0, %s131
      %s135 = sphi 0, %s134
      %s151 = sphi 0, %s135
      %s157 = sphi 0, %s159
      %s160 = sphi 0, %s157
      %s161 = sphi 0, %s160
      %s177 = sphi 0, %s161
      %s187 = sphi 0, %s189
      %s190 = sphi 0, %s187
      %s191 = sphi 0, %s190
      %s207 = sphi 0, %s191
      %s215 = sphi 0, %s217
      %s218 = sphi 0, %s215
      %s219 = sphi 0, %s218
      %s235 = sphi 0, %s219
    $region4: #{multi_headed_attention_relative.8} parent=1 // loop_header_branch
      %19 = sbr.rel (%p17) target = $region8
    $region5: #{multi_headed_attention_relative.8} parent=1 // loop_body
      %s21 = ssub.s32 %s16, 1
      %s22 = ssub.s32 %s16, 2
      %s32 = sadd.s32 1, %s25
      %p33 = scmp.ge.s32.totalorder %s32, 4
      %s34 = scalar_select %p33, 0, %s32
      %s35 = sadd.s32 1, %s24
      %s36 = scalar_select %p33, %s35, %s24
      %p37 = scmp.ge.s32.totalorder %s36, 2
      %s38 = scalar_select %p37, 0, %s36
      %s39 = sadd.s32 1, %s23
      %s40 = scalar_select %p37, %s39, %s23
      %p41 = scmp.ge.s32.totalorder %s40, 1
      %s42 = scalar_select %p41, 0, %s40
      %s43 = ssub.s32 %s24, %s38
      %s44 = ssub.s32 %s25, %s34
      %s45 = sor.u32 %s43, %s44
      %s46 = ssub.s32 %s23, %s42
      %s47 = sor.u32 %s45, %s46
      %p48 = scmp.eq.s32.totalorder %s47, 0
      %s50 = sadd.s32 %s49, 1
      %s51 = scalar_select %p48, %s49, %s50
      %p54 = pneg %p48
      %p55 = scmp.eq.s32.totalorder %s16, 7
      %p56 = por %p54, %p55
      %p57 = scmp.ne.s32.totalorder %s49, %s52
      %p58 = scmp.eq.s32.totalorder %s16, 0
      %p59 = por %p57, %p58
      %p60 = scmp.ne.s32.totalorder %s49, %s52
      %p61 = scmp.eq.s32.totalorder %s21, 7
      %p62 = por %p60, %p61
      %p63 = scmp.ne.s32.totalorder %s52, %s53
      %p64 = scmp.eq.s32.totalorder %s21, 0
      %p65 = por %p63, %p64
      %p66 = scmp.ne.s32.totalorder %s52, %s53
      %p67 = scmp.eq.s32.totalorder %s22, 7
      %p68 = por %p66, %p67
      %p70 = scmp.ne.s32.totalorder %s53, %s69
      %p71 = scmp.eq.s32.totalorder %s22, 0
      %p72 = por %p70, %p71
      %s73 = ssub.s32 %s24, %s38
      %s74 = ssub.s32 %s25, %s34
      %s75 = sor.u32 %s73, %s74
      %p76 = scmp.eq.s32.totalorder %s75, 0
      %s78 = sadd.s32 %s77, 1
      %s79 = scalar_select %p76, %s77, %s78
      %p82 = pneg %p76
      %p83 = scmp.eq.s32.totalorder %s16, 7
      %p84 = por %p82, %p83
      %p85 = scmp.ne.s32.totalorder %s77, %s80
      %p86 = scmp.eq.s32.totalorder %s16, 0
      %p87 = por %p85, %p86
      %p88 = scmp.ne.s32.totalorder %s77, %s80
      %p89 = scmp.eq.s32.totalorder %s21, 7
      %p90 = por %p88, %p89
      %p91 = scmp.ne.s32.totalorder %s80, %s81
      %p92 = scmp.eq.s32.totalorder %s21, 0
      %p93 = por %p91, %p92
      %p94 = scmp.ne.s32.totalorder %s80, %s81
      %p95 = scmp.eq.s32.totalorder %s22, 7
      %p96 = por %p94, %p95
      %p98 = scmp.ne.s32.totalorder %s81, %s97
      %p99 = scmp.eq.s32.totalorder %s22, 0
      %p100 = por %p98, %p99
      %s101 = ssub.s32 %s24, %s38
      %s102 = ssub.s32 %s25, %s34
      %s103 = sor.u32 %s101, %s102
      %p104 = scmp.eq.s32.totalorder %s103, 0
      %s106 = sadd.s32 %s105, 1
      %s107 = scalar_select %p104, %s105, %s106
      %p110 = pneg %p104
      %p111 = scmp.eq.s32.totalorder %s16, 7
      %p112 = por %p110, %p111
      %p113 = scmp.ne.s32.totalorder %s105, %s108
      %p114 = scmp.eq.s32.totalorder %s16, 0
      %p115 = por %p113, %p114
      %p116 = scmp.ne.s32.totalorder %s105, %s108
      %p117 = scmp.eq.s32.totalorder %s21, 7
      %p118 = por %p116, %p117
      %p119 = scmp.ne.s32.totalorder %s108, %s109
      %p120 = scmp.eq.s32.totalorder %s21, 0
      %p121 = por %p119, %p120
      %p122 = scmp.ne.s32.totalorder %s108, %s109
      %p123 = scmp.eq.s32.totalorder %s22, 7
      %p124 = por %p122, %p123
      %p126 = scmp.ne.s32.totalorder %s109, %s125
      %p127 = scmp.eq.s32.totalorder %s22, 0
      %p128 = por %p126, %p127
      %s129 = ssub.s32 %s23, %s42
      %p130 = scmp.eq.s32.totalorder %s129, 0
      %s132 = sadd.s32 %s131, 1
      %s133 = scalar_select %p130, %s131, %s132
      %p136 = pneg %p130
      %p137 = scmp.eq.s32.totalorder %s16, 7
      %p138 = por %p136, %p137
      %p139 = scmp.ne.s32.totalorder %s131, %s134
      %p140 = scmp.eq.s32.totalorder %s16, 0
      %p141 = por %p139, %p140
      %p142 = scmp.ne.s32.totalorder %s131, %s134
      %p143 = scmp.eq.s32.totalorder %s21, 7
      %p144 = por %p142, %p143
      %p145 = scmp.ne.s32.totalorder %s134, %s135
      %p146 = scmp.eq.s32.totalorder %s21, 0
      %p147 = por %p145, %p146
      %p148 = scmp.ne.s32.totalorder %s134, %s135
      %p149 = scmp.eq.s32.totalorder %s22, 7
      %p150 = por %p148, %p149
      %p152 = scmp.ne.s32.totalorder %s135, %s151
      %p153 = scmp.eq.s32.totalorder %s22, 0
      %p154 = por %p152, %p153
      %s155 = ssub.s32 %s23, %s42
      %p156 = scmp.eq.s32.totalorder %s155, 0
      %s158 = sadd.s32 %s157, 1
      %s159 = scalar_select %p156, %s157, %s158
      %p162 = pneg %p156
      %p163 = scmp.eq.s32.totalorder %s16, 7
      %p164 = por %p162, %p163
      %p165 = scmp.ne.s32.totalorder %s157, %s160
      %p166 = scmp.eq.s32.totalorder %s16, 0
      %p167 = por %p165, %p166
      %p168 = scmp.ne.s32.totalorder %s157, %s160
      %p169 = scmp.eq.s32.totalorder %s21, 7
      %p170 = por %p168, %p169
      %p171 = scmp.ne.s32.totalorder %s160, %s161
      %p172 = scmp.eq.s32.totalorder %s21, 0
      %p173 = por %p171, %p172
      %p174 = scmp.ne.s32.totalorder %s160, %s161
      %p175 = scmp.eq.s32.totalorder %s22, 7
      %p176 = por %p174, %p175
      %p178 = scmp.ne.s32.totalorder %s161, %s177
      %p179 = scmp.eq.s32.totalorder %s22, 0
      %p180 = por %p178, %p179
      %s181 = ssub.s32 %s24, %s38
      %s182 = ssub.s32 %s25, %s34
      %s183 = sor.u32 %s181, %s182
      %s184 = ssub.s32 %s23, %s42
      %s185 = sor.u32 %s183, %s184
      %p186 = scmp.eq.s32.totalorder %s185, 0
      %s188 = sadd.s32 %s187, 1
      %s189 = scalar_select %p186, %s187, %s188
      %p192 = pneg %p186
      %p193 = scmp.eq.s32.totalorder %s16, 7
      %p194 = por %p192, %p193
      %p195 = scmp.ne.s32.totalorder %s187, %s190
      %p196 = scmp.eq.s32.totalorder %s16, 0
      %p197 = por %p195, %p196
      %p198 = scmp.ne.s32.totalorder %s187, %s190
      %p199 = scmp.eq.s32.totalorder %s21, 7
      %p200 = por %p198, %p199
      %p201 = scmp.ne.s32.totalorder %s190, %s191
      %p202 = scmp.eq.s32.totalorder %s21, 0
      %p203 = por %p201, %p202
      %p204 = scmp.ne.s32.totalorder %s190, %s191
      %p205 = scmp.eq.s32.totalorder %s22, 7
      %p206 = por %p204, %p205
      %p208 = scmp.ne.s32.totalorder %s191, %s207
      %p209 = scmp.eq.s32.totalorder %s22, 0
      %p210 = por %p208, %p209
      %s211 = ssub.s32 %s24, %s38
      %s212 = ssub.s32 %s23, %s42
      %s213 = sor.u32 %s211, %s212
      %p214 = scmp.eq.s32.totalorder %s213, 0
      %s216 = sadd.s32 %s215, 1
      %s217 = scalar_select %p214, %s215, %s216
      %p220 = pneg %p214
      %p221 = scmp.eq.s32.totalorder %s16, 7
      %p222 = por %p220, %p221
      %p223 = scmp.ne.s32.totalorder %s215, %s218
      %p224 = scmp.eq.s32.totalorder %s16, 0
      %p225 = por %p223, %p224
      %p226 = scmp.ne.s32.totalorder %s215, %s218
      %p227 = scmp.eq.s32.totalorder %s21, 7
      %p228 = por %p226, %p227
      %p229 = scmp.ne.s32.totalorder %s218, %s219
      %p230 = scmp.eq.s32.totalorder %s21, 0
      %p231 = por %p229, %p230
      %p232 = scmp.ne.s32.totalorder %s218, %s219
      %p233 = scmp.eq.s32.totalorder %s22, 7
      %p234 = por %p232, %p233
      %p236 = scmp.ne.s32.totalorder %s219, %s235
      %p237 = scmp.eq.s32.totalorder %s22, 0
      %p238 = por %p236, %p237
      %p239 = scmp.le.s32.totalorder 1, %s16
      %p240 = scmp.lt.s32.totalorder %s16, 9
      %p241 = pnand %p239, %p240
      %p242 = pneg %p241
      // Predicated region
      $region9: #{multi_headed_attention_relative.8} parent=5 // pred_check
        _
      $region10: #{multi_headed_attention_relative.8} parent=5 // pred_check_branch
        %244 = sbr.rel (%p241) target = $region12
      $region11: #{multi_headed_attention_relative.8} parent=5 // pred_region
        %s245 = ssub.s32 %s16, 1
        // Predicated region
        $region13: #{multi_headed_attention_relative.8} parent=11 // pred_check
          %p246 = pneg %p147
        $region14: #{multi_headed_attention_relative.8} parent=11 // pred_check_branch
          %248 = sbr.rel (%p246) target = $region16
        $region15: #{multi_headed_attention_relative.8} parent=11 // pred_region
          %s249 = smul.u32 8, %s26
          %p250 = scmp.lt.s32.totalorder %s249, 7
          %s251 = scalar_select %p250, %s249, 7
          %s252 = smul.addr %s251, 4
          %s253 = scalar_lea.vmem %s3, %s252
          %s254 = smul.u32 8, %s26
        $region16: #{multi_headed_attention_relative.8} parent=11 // pred_fallthru
          _
        // Predicated region
        $region17: #{multi_headed_attention_relative.8} parent=11 // pred_check
          %p255 = pneg %p173
        $region18: #{multi_headed_attention_relative.8} parent=11 // pred_check_branch
          %257 = sbr.rel (%p255) target = $region20
        $region19: #{multi_headed_attention_relative.8} parent=11 // pred_region
          %s258 = smul.u32 8, %s26
          %p259 = scmp.lt.s32.totalorder %s258, 7
          %s260 = scalar_select %p259, %s258, 7
          %s261 = smul.addr %s260, 4
          %s262 = scalar_lea.vmem %s4, %s261
          %s263 = smul.u32 8, %s26
        $region20: #{multi_headed_attention_relative.8} parent=11 // pred_fallthru
          _
      $region12: #{multi_headed_attention_relative.8} parent=5 // pred_fallthru
        _
      %p264 = scmp.lt.s32.totalorder %s16, 8
      // Predicated region
      $region21: #{multi_headed_attention_relative.8} parent=5 // pred_check
        %p265 = pneg %p264
      $region22: #{multi_headed_attention_relative.8} parent=5 // pred_check_branch
        %267 = sbr.rel (%p265) target = $region24
      $region23: #{multi_headed_attention_relative.8} parent=5 // pred_region
        // Predicated region
        $region25: #{multi_headed_attention_relative.8} parent=23 // pred_check
          %p268 = pneg %p59
        $region26: #{multi_headed_attention_relative.8} parent=23 // pred_check_branch
          %270 = sbr.rel (%p268) target = $region28
        $region27: #{multi_headed_attention_relative.8} parent=23 // pred_region
          %p271 = scmp.lt.s32.totalorder %s24, 1
          %s272 = scalar_select %p271, %s24, 1
          %p273 = scmp.lt.s32.totalorder %s25, 3
          %s274 = scalar_select %p273, %s25, 3
          %p275 = scmp.lt.s32.totalorder %s23, 0
          %s276 = scalar_select %p275, %s23, 0
          %s277 = sadd.s32 %s276, %s274
          %s278 = smul.addr %s272, 4
          %s279 = sadd.s32 %s277, %s278
          %s280 = smul.addr %s279, 4
          %s281 = scalar_lea.vmem %s0, %s280
        $region28: #{multi_headed_attention_relative.8} parent=23 // pred_fallthru
          _
        // Predicated region
        $region29: #{multi_headed_attention_relative.8} parent=23 // pred_check
          %p282 = pneg %p87
        $region30: #{multi_headed_attention_relative.8} parent=23 // pred_check_branch
          %284 = sbr.rel (%p282) target = $region32
        $region31: #{multi_headed_attention_relative.8} parent=23 // pred_region
          %p285 = scmp.lt.s32.totalorder %s24, 1
          %s286 = scalar_select %p285, %s24, 1
          %p287 = scmp.lt.s32.totalorder %s25, 3
          %s288 = scalar_select %p287, %s25, 3
          %s289 = smul.addr %s286, 4
          %s290 = sadd.s32 %s288, %s289
          %s291 = smul.addr %s290, 4
          %s292 = scalar_lea.vmem %s1, %s291
        $region32: #{multi_headed_attention_relative.8} parent=23 // pred_fallthru
          _
        // Predicated region
        $region33: #{multi_headed_attention_relative.8} parent=23 // pred_check
          %p293 = pneg %p115
        $region34: #{multi_headed_attention_relative.8} parent=23 // pred_check_branch
          %295 = sbr.rel (%p293) target = $region36
        $region35: #{multi_headed_attention_relative.8} parent=23 // pred_region
          %p296 = scmp.lt.s32.totalorder %s24, 1
          %s297 = scalar_select %p296, %s24, 1
          %p298 = scmp.lt.s32.totalorder %s25, 3
          %s299 = scalar_select %p298, %s25, 3
          %s300 = smul.addr %s297, 4
          %s301 = sadd.s32 %s299, %s300
          %s302 = smul.addr %s301, 4
          %s303 = scalar_lea.vmem %s2, %s302
        $region36: #{multi_headed_attention_relative.8} parent=23 // pred_fallthru
          _
      $region24: #{multi_headed_attention_relative.8} parent=5 // pred_fallthru
        _
      %p304 = scmp.le.s32.totalorder 1, %s16
      %p305 = scmp.lt.s32.totalorder %s16, 9
      %p306 = pnand %p304, %p305
      %p307 = pneg %p306
      // Predicated region
      $region37: #{multi_headed_attention_relative.8} parent=5 // pred_check
        _
      $region38: #{multi_headed_attention_relative.8} parent=5 // pred_check_branch
        %309 = sbr.rel (%p306) target = $region40
      $region39: #{multi_headed_attention_relative.8} parent=5 // pred_region
        %s310 = ssub.s32 %s16, 1
        %p311 = scmp.lt.s32.totalorder %s27, 1
        %s312 = scalar_select %p311, %s27, 1
        %p313 = scmp.lt.s32.totalorder %s28, 3
        %s314 = scalar_select %p313, %s28, 3
        %p315 = scmp.lt.s32.totalorder %s26, 0
        %s316 = scalar_select %p315, %s26, 0
        %s317 = sadd.s32 %s316, %s314
        %s318 = smul.addr %s312, 4
        %s319 = sadd.s32 %s317, %s318
        %s320 = smul.addr %s319, 4
        %s321 = scalar_lea.vmem %s0, %s320
        %p322 = pneg %p65
        %p323 = pneg %p62
        %p324 = scmp.lt.s32.totalorder %s27, 1
        %s325 = scalar_select %p324, %s27, 1
        %p326 = scmp.lt.s32.totalorder %s28, 3
        %s327 = scalar_select %p326, %s28, 3
        %s328 = smul.addr %s325, 4
        %s329 = sadd.s32 %s327, %s328
        %s330 = smul.addr %s329, 4
        %s331 = scalar_lea.vmem %s1, %s330
        %p332 = pneg %p93
        %p333 = pneg %p90
        %p334 = scmp.lt.s32.totalorder %s27, 1
        %s335 = scalar_select %p334, %s27, 1
        %p336 = scmp.lt.s32.totalorder %s28, 3
        %s337 = scalar_select %p336, %s28, 3
        %s338 = smul.addr %s335, 4
        %s339 = sadd.s32 %s337, %s338
        %s340 = smul.addr %s339, 4
        %s341 = scalar_lea.vmem %s2, %s340
        %p342 = pneg %p121
        %p343 = pneg %p118
        %s344 = smul.u32 8, %s26
        %p345 = scmp.lt.s32.totalorder %s344, 7
        %s346 = scalar_select %p345, %s344, 7
        %s347 = smul.addr %s346, 4
        %s348 = scalar_lea.vmem %s3, %s347
        %p349 = pneg %p147
        %p350 = pneg %p144
        %s351 = smul.u32 8, %s26
        %p352 = scmp.lt.s32.totalorder %s351, 7
        %s353 = scalar_select %p352, %s351, 7
        %s354 = smul.addr %s353, 4
        %s355 = scalar_lea.vmem %s4, %s354
        %p356 = pneg %p173
        %p357 = pneg %p170
        %p358 = pneg %p203
        %p359 = pneg %p200
        %p360 = scmp.lt.s32.totalorder %s27, 1
        %s361 = scalar_select %p360, %s27, 1
        %p362 = scmp.lt.s32.totalorder %s28, 3
        %s363 = scalar_select %p362, %s28, 3
        %p364 = scmp.lt.s32.totalorder %s26, 0
        %s365 = scalar_select %p364, %s26, 0
        %s366 = sadd.s32 %s365, %s363
        %s367 = smul.addr %s361, 4
        %s368 = sadd.s32 %s366, %s367
        %s369 = smul.addr %s368, 4
        %s370 = scalar_lea.vmem %s5, %s369
        %p371 = pneg %p231
        %p372 = pneg %p228
        %s373 = sand.u32 %s218, 1
        %s374 = scalar_lea.sflag [#allocation3], %s373
        %s375 = sand.u32 %s218, 1
        %s376 = smul.addr %s375, 8
        %s377 = scalar_lea.vmem [#allocation2], %s376
        %p378 = scmp.lt.s32.totalorder %s27, 1
        %s379 = scalar_select %p378, %s27, 1
        %p380 = scmp.lt.s32.totalorder %s28, 3
        %s381 = scalar_select %p380, %s28, 3
        %p382 = scmp.lt.s32.totalorder %s26, 0
        %s383 = scalar_select %p382, %s26, 0
        %s384 = sadd.s32 %s383, %s381
        %s385 = smul.addr %s379, 4
        %s386 = sadd.s32 %s384, %s385
        %s387 = smul.addr %s386, 4
        %s388 = scalar_lea.vmem %s0, %s387
        %p389 = scmp.lt.s32.totalorder %s27, 1
        %s390 = scalar_select %p389, %s27, 1
        %p391 = scmp.lt.s32.totalorder %s28, 3
        %s392 = scalar_select %p391, %s28, 3
        %s393 = smul.addr %s390, 4
        %s394 = sadd.s32 %s392, %s393
        %s395 = smul.addr %s394, 4
        %s396 = scalar_lea.vmem %s1, %s395
        %p397 = scmp.lt.s32.totalorder %s27, 1
        %s398 = scalar_select %p397, %s27, 1
        %p399 = scmp.lt.s32.totalorder %s28, 3
        %s400 = scalar_select %p399, %s28, 3
        %s401 = smul.addr %s398, 4
        %s402 = sadd.s32 %s400, %s401
        %s403 = smul.addr %s402, 4
        %s404 = scalar_lea.vmem %s2, %s403
        %s405 = smul.u32 8, %s26
        %p406 = scmp.lt.s32.totalorder %s405, 7
        %s407 = scalar_select %p406, %s405, 7
        %s408 = smul.addr %s407, 4
        %s409 = scalar_lea.vmem %s3, %s408
        %s410 = smul.u32 8, %s26
        %s411 = smul.u32 8, %s26
        %p412 = scmp.lt.s32.totalorder %s411, 7
        %s413 = scalar_select %p412, %s411, 7
        %s414 = smul.addr %s413, 4
        %s415 = scalar_lea.vmem %s4, %s414
        %s416 = smul.u32 8, %s26
        %p417 = scmp.lt.s32.totalorder %s27, 1
        %s418 = scalar_select %p417, %s27, 1
        %p419 = scmp.lt.s32.totalorder %s28, 3
        %s420 = scalar_select %p419, %s28, 3
        %p421 = scmp.lt.s32.totalorder %s26, 0
        %s422 = scalar_select %p421, %s26, 0
        %s423 = sadd.s32 %s422, %s420
        %s424 = smul.addr %s418, 4
        %s425 = sadd.s32 %s423, %s424
        %s426 = smul.addr %s425, 4
        %s427 = scalar_lea.vmem %s5, %s426
        %v429 = vld [vmem:[%s388] sm:$0xf]
        %v430 = vunpack.c.l.bf16 %v429
        %v431 = vmul.f32 %v430, 0.35355338
        %v432 = vpack.c.bf16 %v431, %v431
        %v433 = vld [vmem:[%s396] sm:$0xf]
        %v434 = vld [vmem:[%s404] sm:$0xf]
        %v435 = vld [vmem:[%s409] sm:$0xf]
        %v436 = vld [vmem:[%s409 + $0x4] sm:$0xf]
        %v437 = vld [vmem:[%s409 + $0x8] sm:$0xf]
        %v438 = vld [vmem:[%s409 + $0xc] sm:$0xf]
        %v439 = vld [vmem:[%s409 + $0x10] sm:$0xf]
        %v440 = vld [vmem:[%s409 + $0x14] sm:$0xf]
        %v441 = vld [vmem:[%s409 + $0x18] sm:$0xf]
        %v442 = vld [vmem:[%s409 + $0x1c] sm:$0xf]
        %v443 = vld [vmem:[%s415] sm:$0xf]
        %v444 = vld [vmem:[%s415 + $0x4] sm:$0xf]
        %v445 = vld [vmem:[%s415 + $0x8] sm:$0xf]
        %v446 = vld [vmem:[%s415 + $0xc] sm:$0xf]
        %v447 = vld [vmem:[%s415 + $0x10] sm:$0xf]
        %v448 = vld [vmem:[%s415 + $0x14] sm:$0xf]
        %v449 = vld [vmem:[%s415 + $0x18] sm:$0xf]
        %v450 = vld [vmem:[%s415 + $0x1c] sm:$0xf]
        %v452 = vcombine.high %v431, %v431
        %v454 = vunpack.c.l.s4 1966171168
        %v455 = vunpack.c.0.s8 %v454
        %v456 = vlaneseq
        %v457 = vshrl.u32 %v456, 7
        %v458 = vsub.s32 %v455, %v457
        %v459 = vrot.slane %v431, %v458
        %v461 = vunpack.c.l.s4 1966171168
        %v462 = vunpack.c.0.s8 %v461
        %v463 = vlaneseq
        %v464 = vshrl.u32 %v463, 7
        %v465 = vsub.s32 %v462, %v464
        %v466 = vrot.slane %v452, %v465
        %v467 = vcombine.high %v459, %v459
        %v468 = vcombine.high %v466, %v466
        %v470 = vunpack.c.l.s4 1966171168
        %v471 = vunpack.c.0.s8 %v470
        %v472 = vlaneseq
        %v473 = vshrl.u32 %v472, 7
        %v474 = vsub.s32 %v471, %v473
        %v475 = vrot.slane %v459, %v474
        %v477 = vunpack.c.l.s4 1966171168
        %v478 = vunpack.c.0.s8 %v477
        %v479 = vlaneseq
        %v480 = vshrl.u32 %v479, 7
        %v481 = vsub.s32 %v478, %v480
        %v482 = vrot.slane %v466, %v481
        %v484 = vunpack.c.l.s4 1966171168
        %v485 = vunpack.c.0.s8 %v484
        %v486 = vlaneseq
        %v487 = vshrl.u32 %v486, 7
        %v488 = vsub.s32 %v485, %v487
        %v489 = vrot.slane %v467, %v488
        %v491 = vunpack.c.l.s4 1966171168
        %v492 = vunpack.c.0.s8 %v491
        %v493 = vlaneseq
        %v494 = vshrl.u32 %v493, 7
        %v495 = vsub.s32 %v492, %v494
        %v496 = vrot.slane %v468, %v495
        %v497 = vcombine.high %v475, %v475
        %v498 = vcombine.high %v482, %v482
        %v499 = vcombine.high %v489, %v489
        %v500 = vcombine.high %v496, %v496
        %v501 = vunpack.c.l.bf16 %v435
        %v502 = vunpack.c.l.bf16 %v436
        %v503 = vunpack.c.l.bf16 %v437
        %v504 = vunpack.c.l.bf16 %v438
        %v505 = vunpack.c.l.bf16 %v439
        %v506 = vunpack.c.l.bf16 %v440
        %v507 = vunpack.c.l.bf16 %v441
        %v508 = vunpack.c.l.bf16 %v442
        %v509 = vlaneseq
        %v510 = vshrl.u32 %v509, 7
        %v511 = vsub.s32 0, %v510
        %v512 = vrot.slane %v475, %v511
        %v513 = vlaneseq
        %v514 = vshrl.u32 %v513, 7
        %v515 = vsub.s32 0, %v514
        %v516 = vrot.slane %v489, %v515
        %v517 = vlaneseq
        %v518 = vshrl.u32 %v517, 7
        %v519 = vsub.s32 0, %v518
        %v520 = vrot.slane %v497, %v519
        %v521 = vlaneseq
        %v522 = vshrl.u32 %v521, 7
        %v523 = vsub.s32 0, %v522
        %v524 = vrot.slane %v499, %v523
        %v525 = vlaneseq
        %v526 = vshrl.u32 %v525, 7
        %v527 = vsub.s32 0, %v526
        %v528 = vrot.slane %v482, %v527
        %v529 = vlaneseq
        %v530 = vshrl.u32 %v529, 7
        %v531 = vsub.s32 0, %v530
        %v532 = vrot.slane %v496, %v531
        %v533 = vlaneseq
        %v534 = vshrl.u32 %v533, 7
        %v535 = vsub.s32 0, %v534
        %v536 = vrot.slane %v498, %v535
        %v537 = vlaneseq
        %v538 = vshrl.u32 %v537, 7
        %v539 = vsub.s32 0, %v538
        %v540 = vrot.slane %v500, %v539
        %v549 = vmul.f32 %v512, %v501
        %v550 = vmul.f32 %v516, %v502
        %v551 = vmul.f32 %v520, %v503
        %v552 = vmul.f32 %v524, %v504
        %v553 = vmul.f32 %v528, %v505
        %v554 = vmul.f32 %v532, %v506
        %v555 = vmul.f32 %v536, %v507
        %v556 = vmul.f32 %v540, %v508
        %vm557 = vcmask 64512
        %v558 = vsel %vm557, %v549, 0.0
        %559 = vadd.xlane.f32.xlu0 %v558
        %v560 = vpop.xlane.xlu0 %559
        %v561 = vsel %vm557, %v550, 0.0
        %562 = vadd.xlane.f32.xlu0 %v561
        %v563 = vpop.xlane.xlu0 %562
        %v564 = vsel %vm557, %v551, 0.0
        %565 = vadd.xlane.f32.xlu0 %v564
        %v566 = vpop.xlane.xlu0 %565
        %v567 = vsel %vm557, %v552, 0.0
        %568 = vadd.xlane.f32.xlu0 %v567
        %v569 = vpop.xlane.xlu0 %568
        %v570 = vsel %vm557, %v553, 0.0
        %571 = vadd.xlane.f32.xlu0 %v570
        %v572 = vpop.xlane.xlu0 %571
        %v573 = vsel %vm557, %v554, 0.0
        %574 = vadd.xlane.f32.xlu0 %v573
        %v575 = vpop.xlane.xlu0 %574
        %v576 = vsel %vm557, %v555, 0.0
        %577 = vadd.xlane.f32.xlu0 %v576
        %v578 = vpop.xlane.xlu0 %577
        %v579 = vsel %vm557, %v556, 0.0
        %580 = vadd.xlane.f32.xlu0 %v579
        %v581 = vpop.xlane.xlu0 %580
        %v590 = vlaneseq
        %v591 = vand.u32 %v590, 127
        %v592 = vlaneseq
        %v593 = vshrl.u32 %v592, 7
        %v594 = vsub.s32 %v591, %v593
        %v595 = vrot.slane %v560, %v594
        %v596 = vlaneseq
        %v597 = vshrl.u32 %v596, 7
        %v598 = vsub.s32 %v591, %v597
        %v599 = vrot.slane %v563, %v598
        %v600 = vlaneseq
        %v601 = vshrl.u32 %v600, 7
        %v602 = vsub.s32 %v591, %v601
        %v603 = vrot.slane %v566, %v602
        %v604 = vlaneseq
        %v605 = vshrl.u32 %v604, 7
        %v606 = vsub.s32 %v591, %v605
        %v607 = vrot.slane %v569, %v606
        %v608 = vlaneseq
        %v609 = vshrl.u32 %v608, 7
        %v610 = vsub.s32 %v591, %v609
        %v611 = vrot.slane %v572, %v610
        %v612 = vlaneseq
        %v613 = vshrl.u32 %v612, 7
        %v614 = vsub.s32 %v591, %v613
        %v615 = vrot.slane %v575, %v614
        %v616 = vlaneseq
        %v617 = vshrl.u32 %v616, 7
        %v618 = vsub.s32 %v591, %v617
        %v619 = vrot.slane %v578, %v618
        %v620 = vlaneseq
        %v621 = vshrl.u32 %v620, 7
        %v622 = vsub.s32 %v591, %v621
        %v623 = vrot.slane %v581, %v622
        %vm624 = vcmask 1041409
        %v625 = vsel %vm624, %v599, %v595
        %vm626 = vcmask 1042434
        %v627 = vsel %vm626, %v603, %v625
        %vm628 = vcmask 1043459
        %v629 = vsel %vm628, %v607, %v627
        %vm630 = vcmask 1044484
        %v631 = vsel %vm630, %v611, %v629
        %vm632 = vcmask 1045509
        %v633 = vsel %vm632, %v615, %v631
        %vm634 = vcmask 1046534
        %v635 = vsel %vm634, %v619, %v633
        %vm636 = vcmask 1047559
        %v637 = vsel %vm636, %v623, %v635
        %v640 = vsel %vm557, %v432, 0
        %v643 = vsel %vm557, %v433, 0
        %645 = vmatprep.subr.bf16.mxu0 0
        %646 = vmatpush1.bf16.xpose.msra.mxu0 %v643
        %647 = vmatprep.subr.bf16.mxu0 0
        %648 = vmatpush1.bf16.xpose.msra.mxu0 0
        %649 = vmatprep.subr.bf16.mxu0 0
        %650 = vmatpush1.bf16.xpose.msra.mxu0 0
        %651 = vmatprep.subr.bf16.mxu0 0
        %652 = vmatpush1.bf16.xpose.msra.mxu0 0
        %653 = vmatprep.subr.bf16.mxu0 0
        %654 = vmatpush1.bf16.xpose.msra.mxu0 0
        %655 = vmatprep.subr.bf16.mxu0 0
        %656 = vmatpush1.bf16.xpose.msra.mxu0 0
        %657 = vmatprep.subr.bf16.mxu0 0
        %658 = vmatpush1.bf16.xpose.msra.mxu0 0
        %659 = vmatprep.subr.bf16.mxu0 0
        %660 = vmatpush1.bf16.xpose.msra.mxu0 0
        %661 = vmatprep.subr.bf16.mxu0 0
        %662 = vmatpush1.bf16.xpose.msra.mxu0 0
        %663 = vmatprep.subr.bf16.mxu0 0
        %664 = vmatpush1.bf16.xpose.msra.mxu0 0
        %665 = vmatprep.subr.bf16.mxu0 0
        %666 = vmatpush1.bf16.xpose.msra.mxu0 0
        %667 = vmatprep.subr.bf16.mxu0 0
        %668 = vmatpush1.bf16.xpose.msra.mxu0 0
        %669 = vmatprep.subr.bf16.mxu0 0
        %670 = vmatpush1.bf16.xpose.msra.mxu0 0
        %671 = vmatprep.subr.bf16.mxu0 0
        %672 = vmatpush1.bf16.xpose.msra.mxu0 0
        %673 = vmatprep.subr.bf16.mxu0 0
        %674 = vmatpush1.bf16.xpose.msra.mxu0 0
        %675 = vmatprep.subr.bf16.mxu0 0
        %676 = vmatpush1.bf16.xpose.msra.mxu0 0
        %677 = vmatprep.mubr.bf16.mxu0 0
        %678 = vmatmul.mubr.bf16.gmra.mrb[0].mxu0 %v640
        %v679 = vpop.f32.mrb[0].mxu0
        %v680 = vadd.f32 %v637, %v679
        %v681 = vpop.f32.mrb[0].mxu0
        %v682 = vpop.f32.mrb[0].mxu0
        %v683 = vpop.f32.mrb[0].mxu0
        %684 = vdwg.mxu0
        %v685 = vsel %vm557, %v680, -inf
        %686 = vmax.xlane.f32.xlu0 %v685
        %v687 = vpop.xlane.xlu0 %686
        %v688 = vsub.f32 %v680, %v687
        %v689 = vmul.f32 %v688, 1.442695
        %v690 = vpow.pop %v689
        %v691 = vsel %vm557, %v690, 0.0
        %692 = vadd.xlane.f32.xlu0 %v691
        %v693 = vpop.xlane.xlu0 %692
        %v694 = vrcp.pop %v693
        %v695 = vmul.f32 %v690, %v694
        %v696 = vpack.c.bf16 %v695, %v695
        %v697 = vlaneseq
        %v698 = vshrl.u32 %v697, 7
        %v699 = vsub.s32 0, %v698
        %v700 = vrot.slane %v695, %v699
        %702 = vbcast.lane.b32.xlu0 %v700, 256
        %v703 = vpop.permute.xlu0 %702
        %v704 = vlaneseq
        %v705 = vshrl.u32 %v704, 7
        %v706 = vsub.s32 1, %v705
        %v707 = vrot.slane %v695, %v706
        %709 = vbcast.lane.b32.xlu0 %v707, 256
        %v710 = vpop.permute.xlu0 %709
        %v711 = vlaneseq
        %v712 = vshrl.u32 %v711, 7
        %v713 = vsub.s32 2, %v712
        %v714 = vrot.slane %v695, %v713
        %716 = vbcast.lane.b32.xlu0 %v714, 256
        %v717 = vpop.permute.xlu0 %716
        %v718 = vlaneseq
        %v719 = vshrl.u32 %v718, 7
        %v720 = vsub.s32 3, %v719
        %v721 = vrot.slane %v695, %v720
        %723 = vbcast.lane.b32.xlu0 %v721, 256
        %v724 = vpop.permute.xlu0 %723
        %v725 = vlaneseq
        %v726 = vshrl.u32 %v725, 7
        %v727 = vsub.s32 4, %v726
        %v728 = vrot.slane %v695, %v727
        %730 = vbcast.lane.b32.xlu0 %v728, 256
        %v731 = vpop.permute.xlu0 %730
        %v732 = vlaneseq
        %v733 = vshrl.u32 %v732, 7
        %v734 = vsub.s32 5, %v733
        %v735 = vrot.slane %v695, %v734
        %737 = vbcast.lane.b32.xlu0 %v735, 256
        %v738 = vpop.permute.xlu0 %737
        %v739 = vlaneseq
        %v740 = vshrl.u32 %v739, 7
        %v741 = vsub.s32 6, %v740
        %v742 = vrot.slane %v695, %v741
        %744 = vbcast.lane.b32.xlu0 %v742, 256
        %v745 = vpop.permute.xlu0 %744
        %v746 = vlaneseq
        %v747 = vshrl.u32 %v746, 7
        %v748 = vsub.s32 7, %v747
        %v749 = vrot.slane %v695, %v748
        %751 = vbcast.lane.b32.xlu0 %v749, 256
        %v752 = vpop.permute.xlu0 %751
        %v753 = vunpack.c.l.bf16 %v443
        %v754 = vunpack.c.l.bf16 %v444
        %v755 = vunpack.c.l.bf16 %v445
        %v756 = vunpack.c.l.bf16 %v446
        %v757 = vunpack.c.l.bf16 %v447
        %v758 = vunpack.c.l.bf16 %v448
        %v759 = vunpack.c.l.bf16 %v449
        %v760 = vunpack.c.l.bf16 %v450
        %v761 = vmul.f32 %v703, %v753
        %v762 = vmul.f32 %v710, %v754
        %v763 = vmul.f32 %v717, %v755
        %v764 = vmul.f32 %v724, %v756
        %v765 = vmul.f32 %v731, %v757
        %v766 = vmul.f32 %v738, %v758
        %v767 = vmul.f32 %v745, %v759
        %v768 = vmul.f32 %v752, %v760
        %v769 = vsel %vm557, %v761, 0.0
        %v770 = vrot.slane %v769, 4
        %v771 = vadd.f32 %v769, %v770
        %v772 = vrot.slane %v771, 2
        %v773 = vadd.f32 %v771, %v772
        %v774 = vrot.slane %v773, 1
        %v775 = vadd.f32 %v773, %v774
        %v776 = vsel %vm557, %v762, 0.0
        %v777 = vrot.slane %v776, 4
        %v778 = vadd.f32 %v776, %v777
        %v779 = vrot.slane %v778, 2
        %v780 = vadd.f32 %v778, %v779
        %v781 = vrot.slane %v780, 1
        %v782 = vadd.f32 %v780, %v781
        %v783 = vsel %vm557, %v763, 0.0
        %v784 = vrot.slane %v783, 4
        %v785 = vadd.f32 %v783, %v784
        %v786 = vrot.slane %v785, 2
        %v787 = vadd.f32 %v785, %v786
        %v788 = vrot.slane %v787, 1
        %v789 = vadd.f32 %v787, %v788
        %v790 = vsel %vm557, %v764, 0.0
        %v791 = vrot.slane %v790, 4
        %v792 = vadd.f32 %v790, %v791
        %v793 = vrot.slane %v792, 2
        %v794 = vadd.f32 %v792, %v793
        %v795 = vrot.slane %v794, 1
        %v796 = vadd.f32 %v794, %v795
        %v797 = vsel %vm557, %v765, 0.0
        %v798 = vrot.slane %v797, 4
        %v799 = vadd.f32 %v797, %v798
        %v800 = vrot.slane %v799, 2
        %v801 = vadd.f32 %v799, %v800
        %v802 = vrot.slane %v801, 1
        %v803 = vadd.f32 %v801, %v802
        %v804 = vsel %vm557, %v766, 0.0
        %v805 = vrot.slane %v804, 4
        %v806 = vadd.f32 %v804, %v805
        %v807 = vrot.slane %v806, 2
        %v808 = vadd.f32 %v806, %v807
        %v809 = vrot.slane %v808, 1
        %v810 = vadd.f32 %v808, %v809
        %v811 = vsel %vm557, %v767, 0.0
        %v812 = vrot.slane %v811, 4
        %v813 = vadd.f32 %v811, %v812
        %v814 = vrot.slane %v813, 2
        %v815 = vadd.f32 %v813, %v814
        %v816 = vrot.slane %v815, 1
        %v817 = vadd.f32 %v815, %v816
        %v818 = vsel %vm557, %v768, 0.0
        %v819 = vrot.slane %v818, 4
        %v820 = vadd.f32 %v818, %v819
        %v821 = vrot.slane %v820, 2
        %v822 = vadd.f32 %v820, %v821
        %v823 = vrot.slane %v822, 1
        %v824 = vadd.f32 %v822, %v823
        %v833 = vsel %vm624, %v782, %v775
        %v834 = vsel %vm626, %v789, %v833
        %v835 = vsel %vm628, %v796, %v834
        %v836 = vsel %vm630, %v803, %v835
        %v837 = vsel %vm632, %v810, %v836
        %v838 = vsel %vm634, %v817, %v837
        %v839 = vsel %vm636, %v824, %v838
        %v842 = vsel %vm557, %v696, 0
        %vm844 = vcmask 1043456
        %v846 = vsel %vm844, %v434, 0
        %848 = vmatprep.subr.bf16.mxu0 0
        %849 = vmatpush1.bf16.msra.mxu0 %v846
        %850 = vmatprep.subr.bf16.mxu0 0
        %851 = vmatpush1.bf16.msra.mxu0 0
        %852 = vmatprep.subr.bf16.mxu0 0
        %853 = vmatpush1.bf16.msra.mxu0 0
        %854 = vmatprep.subr.bf16.mxu0 0
        %855 = vmatpush1.bf16.msra.mxu0 0
        %856 = vmatprep.subr.bf16.mxu0 0
        %857 = vmatpush1.bf16.msra.mxu0 0
        %858 = vmatprep.subr.bf16.mxu0 0
        %859 = vmatpush1.bf16.msra.mxu0 0
        %860 = vmatprep.subr.bf16.mxu0 0
        %861 = vmatpush1.bf16.msra.mxu0 0
        %862 = vmatprep.subr.bf16.mxu0 0
        %863 = vmatpush1.bf16.msra.mxu0 0
        %864 = vmatprep.subr.bf16.mxu0 0
        %865 = vmatpush1.bf16.msra.mxu0 0
        %866 = vmatprep.subr.bf16.mxu0 0
        %867 = vmatpush1.bf16.msra.mxu0 0
        %868 = vmatprep.subr.bf16.mxu0 0
        %869 = vmatpush1.bf16.msra.mxu0 0
        %870 = vmatprep.subr.bf16.mxu0 0
        %871 = vmatpush1.bf16.msra.mxu0 0
        %872 = vmatprep.subr.bf16.mxu0 0
        %873 = vmatpush1.bf16.msra.mxu0 0
        %874 = vmatprep.subr.bf16.mxu0 0
        %875 = vmatpush1.bf16.msra.mxu0 0
        %876 = vmatprep.subr.bf16.mxu0 0
        %877 = vmatpush1.bf16.msra.mxu0 0
        %878 = vmatprep.subr.bf16.mxu0 0
        %879 = vmatpush1.bf16.msra.mxu0 0
        %880 = vmatprep.mubr.bf16.mxu0 0
        %881 = vmatmul.mubr.bf16.gmra.mrb[0].mxu0 %v842
        %v882 = vpop.f32.mrb[0].mxu0
        %v883 = vadd.f32 %v839, %v882
        %v884 = vpop.f32.mrb[0].mxu0
        %v885 = vpop.f32.mrb[0].mxu0
        %v886 = vpop.f32.mrb[0].mxu0
        %887 = vdwg.mxu0
        %v888 = vpack.c.bf16 %v883, %v883
        %vm889 = vcmask 60416
        %890 = vst.msk [vmem:[%s427] sm:$0xf] %vm889, %v888
        %p891 = scmp.eq.s32.totalorder %s28, 0
        // Predicated region
        $region41: #{multi_headed_attention_relative.8} parent=39 // pred_check
          %p892 = pneg %p891
        $region42: #{multi_headed_attention_relative.8} parent=39 // pred_check_branch
          %894 = sbr.rel (%p892) target = $region44
        $region43: #{multi_headed_attention_relative.8} parent=39 // pred_region
          %895 = vst.msk [vmem:[%s377] sm:$0xff] %vm557, 0.0
        $region44: #{multi_headed_attention_relative.8} parent=39 // pred_fallthru
          _
        %v896 = vld [vmem:[%s377] sm:$0xff]
        %v897 = vadd.f32 %v896, %v695
        %898 = vst.msk [vmem:[%s377] sm:$0xff] %vm557, %v897
        %p899 = scmp.eq.s32.totalorder %s28, 3
        // Predicated region
        $region45: #{multi_headed_attention_relative.8} parent=39 // pred_check
          %p900 = pneg %p899
        $region46: #{multi_headed_attention_relative.8} parent=39 // pred_check_branch
          %902 = sbr.rel (%p900) target = $region48
        $region47: #{multi_headed_attention_relative.8} parent=39 // pred_region
          %v903 = vld [vmem:[%s377] sm:$0xff]
          %v904 = vmul.f32 %v903, 0.25
          %905 = vst.msk [vmem:[%s377] sm:$0xff] %vm557, %v904
        $region48: #{multi_headed_attention_relative.8} parent=39 // pred_fallthru
          _
        %p906 = scmp.lt.s32.totalorder %s27, 1
        %s907 = scalar_select %p906, %s27, 1
        %p908 = scmp.lt.s32.totalorder %s28, 3
        %s909 = scalar_select %p908, %s28, 3
        %p910 = scmp.lt.s32.totalorder %s26, 0
        %s911 = scalar_select %p910, %s26, 0
        %s912 = sadd.s32 %s911, %s909
        %s913 = smul.addr %s907, 4
        %s914 = sadd.s32 %s912, %s913
        %s915 = smul.addr %s914, 4
        %s916 = scalar_lea.vmem %s5, %s915
        %s917 = sand.u32 %s218, 1
        %s918 = scalar_lea.sflag [#allocation3], %s917
        %s919 = sand.u32 %s218, 1
        %s920 = smul.addr %s919, 8
        %s921 = scalar_lea.vmem [#allocation2], %s920
        // Predicated region
        $region49: #{multi_headed_attention_relative.8} parent=39 // pred_check
          %p922 = pneg %p200
        $region50: #{multi_headed_attention_relative.8} parent=39 // pred_check_branch
          %924 = sbr.rel (%p922) target = $region52
        $region51: #{multi_headed_attention_relative.8} parent=39 // pred_region
          _
        $region52: #{multi_headed_attention_relative.8} parent=39 // pred_fallthru
          _
        // Predicated region
        $region53: #{multi_headed_attention_relative.8} parent=39 // pred_check
          %p925 = pneg %p228
        $region54: #{multi_headed_attention_relative.8} parent=39 // pred_check_branch
          %927 = sbr.rel (%p925) target = $region56
        $region55: #{multi_headed_attention_relative.8} parent=39 // pred_region
          %s929 = ssub.s32 128, 128
          %930 = vsyncadd %s918, %s929
          %s931 = sadd.s32 %s26, %s27
          %s932 = smul.addr %s931, 128
          %s933 = scalar_lea.hbm %s6, %s932
          %s935 = sshll.u32 %s921, 4
          %s936 = int_to_ptr.vmem [resolvable:$true] %s935
          %938 = dma.vmem_to_hbm [thread:$0]  %s936, 128, %s933, %s918
        $region56: #{multi_headed_attention_relative.8} parent=39 // pred_fallthru
          _
      $region40: #{multi_headed_attention_relative.8} parent=5 // pred_fallthru
        _
      %p939 = scmp.le.s32.totalorder 2, %s16
      // Predicated region
      $region57: #{multi_headed_attention_relative.8} parent=5 // pred_check
        %p940 = pneg %p939
      $region58: #{multi_headed_attention_relative.8} parent=5 // pred_check_branch
        %942 = sbr.rel (%p940) target = $region60
      $region59: #{multi_headed_attention_relative.8} parent=5 // pred_region
        %s943 = ssub.s32 %s16, 2
        // Predicated region
        $region61: #{multi_headed_attention_relative.8} parent=59 // pred_check
          %p944 = pneg %p206
        $region62: #{multi_headed_attention_relative.8} parent=59 // pred_check_branch
          %946 = sbr.rel (%p944) target = $region64
        $region63: #{multi_headed_attention_relative.8} parent=59 // pred_region
          %p947 = scmp.lt.s32.totalorder %s30, 1
          %s948 = scalar_select %p947, %s30, 1
          %p949 = scmp.lt.s32.totalorder %s31, 3
          %s950 = scalar_select %p949, %s31, 3
          %p951 = scmp.lt.s32.totalorder %s29, 0
          %s952 = scalar_select %p951, %s29, 0
          %s953 = sadd.s32 %s952, %s950
          %s954 = smul.addr %s948, 4
          %s955 = sadd.s32 %s953, %s954
          %s956 = smul.addr %s955, 4
          %s957 = scalar_lea.vmem %s5, %s956
        $region64: #{multi_headed_attention_relative.8} parent=59 // pred_fallthru
          _
        // Predicated region
        $region65: #{multi_headed_attention_relative.8} parent=59 // pred_check
          %p958 = pneg %p234
        $region66: #{multi_headed_attention_relative.8} parent=59 // pred_check_branch
          %960 = sbr.rel (%p958) target = $region68
        $region67: #{multi_headed_attention_relative.8} parent=59 // pred_region
          %s961 = sand.u32 %s219, 1
          %s962 = scalar_lea.sflag [#allocation3], %s961
          %s963 = sand.u32 %s219, 1
          %s964 = smul.addr %s963, 8
          %s965 = scalar_lea.vmem [#allocation2], %s964
          %966 = dma.done %s962, 128
        $region68: #{multi_headed_attention_relative.8} parent=59 // pred_fallthru
          _
      $region60: #{multi_headed_attention_relative.8} parent=5 // pred_fallthru
        _
    $region6: #{multi_headed_attention_relative.8} parent=1 // loop_footer
      %s20 = sadd.s32 1, %s16
    $region7: #{multi_headed_attention_relative.8} parent=1 // loop_footer_branch
      %15 = sbr.rel target = $region3
    $region8: #{multi_headed_attention_relative.8} parent=1 // loop_exit
      _
    %967 = vsyncpa [#allocation3], 1
    %s968 = scalar_lea.sflag [#allocation3], 1
    %969 = vsyncpa %s968, 1

</llo_original>
